<compile_context>
chip_gen: v5e
topology: v5e:2x2
jax: 0.10.0
libtpu: 0.0.40
codegen_flags: <defaults>
</compile_context>

<pallas_src>
import functools

import jax
import jax.numpy as jnp
import numpy as np
from jax import lax
from jax.experimental import pallas as pl
from jax.experimental.pallas import tpu as pltpu


DIL = 5  # dilation / padding of conv1


# -----------------------------------------------------------------------------
# Fused kernel
# -----------------------------------------------------------------------------
def _fused_block_c_kernel(x_ref, w12_ref, w3_ref, b12_ref, b3_ref, out_ref,
                          xpad_ref, ypad_ref,
                          *, BT, H, W, Cin, dil, zero_every_step):
    WC = W * Cin

    def _zero_scratch():
        xpad_ref[...] = jnp.zeros(xpad_ref.shape, xpad_ref.dtype)
        ypad_ref[...] = jnp.zeros(ypad_ref.shape, ypad_ref.dtype)

    if zero_every_step:
        # Multi-step "parallel" grid: each TensorCore owns its own scratch, so
        # every step must (re)establish the zero halo itself.
        _zero_scratch()
    else:
        # Single-step/single-owner grid: zero once.  Valid because the interior
        # writes below cover exactly the same region on every grid step, so the
        # zero halo persists in scratch.
        pl.when(pl.program_id(0) == 0)(_zero_scratch)

    b12 = b12_ref[...]            # (2, W*Cin)  folded BN/conv biases (lane-tiled)
    bias1 = b12[0:1, :]
    bias2 = b12[1:2, :]
    bias3 = b3_ref[...]           # (1, W*Cout)

    for b in range(BT):           # static unroll over the images of this tile
        # ---- conv1: 3x3, dilation=dil, padding=dil (+ folded BN, ReLU) ------
        xpad_ref[b, pl.ds(dil, H), pl.ds(dil * Cin, WC)] = (
            x_ref[b].astype(xpad_ref.dtype))

        acc1 = jnp.zeros((H, WC), jnp.float32)
        for t in range(9):
            ky, kx = divmod(t, 3)
            tap = xpad_ref[b, pl.ds(ky * dil, H), pl.ds(kx * dil * Cin, WC)]
            acc1 = acc1 + jnp.dot(tap, w12_ref[t],
                                  preferred_element_type=jnp.float32)
        y1 = jnp.maximum(acc1 + bias1, 0.0)                  # (H, W*Cin)

        # ---- conv2: 3x3, padding=1 (+ folded BN, ReLU) -----------------------
        ypad_ref[b, pl.ds(1, H), pl.ds(Cin, WC)] = y1

        acc2 = jnp.zeros((H, WC), jnp.float32)
        for t in range(9):
            ky, kx = divmod(t, 3)
            tap = ypad_ref[b, pl.ds(ky, H), pl.ds(kx * Cin, WC)]
            acc2 = acc2 + jnp.dot(tap, w12_ref[9 + t],
                                  preferred_element_type=jnp.float32)
        y2 = jnp.maximum(acc2 + bias2, 0.0)                  # (H, W*Cin)

        # ---- conv3: 1x1 (block-diagonal) -> lane-dense (H, W*Cout) -----------
        z = jnp.dot(y2, w3_ref[...], preferred_element_type=jnp.float32) + bias3
        out_ref[b] = z.astype(out_ref.dtype)


# -----------------------------------------------------------------------------
# pallas_call wrapper
# -----------------------------------------------------------------------------
def _default_num_batch_tiles(B):
    """1 grid step on single-TensorCore chips (v5e/v6e); 2 parallel on v7x."""
    try:
        kind = jax.devices()[0].device_kind.lower()
    except Exception:
        kind = ""
    if B >= 2 and B % 2 == 0 and ("v7" in kind or "7x" in kind):
        return 2
    return 1


def _full_spec(arr):
    """BlockSpec covering a whole parameter array on every grid step."""
    nd = arr.ndim
    return pl.BlockSpec(arr.shape, lambda i, _nd=nd: (0,) * _nd)


def fused_block_c_call(x2d, w12, w3, b12, b3, *, H, W, Cin, Cout, dil,
                       num_tiles=None):
    B = x2d.shape[0]
    if num_tiles is None:
        num_tiles = _default_num_batch_tiles(B)
    assert B % num_tiles == 0, (B, num_tiles)
    BT = B // num_tiles

    kernel = functools.partial(
        _fused_block_c_kernel, BT=BT, H=H, W=W, Cin=Cin, dil=dil,
        zero_every_step=(num_tiles > 1))

    return pl.pallas_call(
        kernel,
        out_shape=jax.ShapeDtypeStruct((B, H, W * Cout), x2d.dtype),
        grid=(num_tiles,),
        in_specs=[
            pl.BlockSpec((BT, H, W * Cin), lambda i: (i, 0, 0)),
            _full_spec(w12), _full_spec(w3), _full_spec(b12), _full_spec(b3),
        ],
        out_specs=pl.BlockSpec((BT, H, W * Cout), lambda i: (i, 0, 0)),
        scratch_shapes=[
            pltpu.VMEM((BT, H + 2 * dil, (W + 2 * dil) * Cin), jnp.float32),
            pltpu.VMEM((BT, H + 2, (W + 2) * Cin), jnp.float32),
        ],
        compiler_params=pltpu.CompilerParams(
            dimension_semantics=("parallel",)),
    )(x2d, w12, w3, b12, b3)


# -----------------------------------------------------------------------------
# Parameter init + one-time packing + full forward
# -----------------------------------------------------------------------------
def init_params(key, in_c, out_c, dtype=jnp.float32):
    ks = jax.random.split(key, 10)
    p = {}
    # Conv weights stored directly in (kh, kw, Cin, Cout) layout.
    p["w1"] = jax.random.normal(ks[0], (3, 3, in_c, in_c), dtype) * 0.1
    p["b1"] = jax.random.normal(ks[1], (in_c,), dtype) * 0.1
    p["bn1_gamma"] = 1.0 + 0.1 * jax.random.normal(ks[2], (in_c,), dtype)
    p["bn1_beta"] = 0.1 * jax.random.normal(ks[3], (in_c,), dtype)
    p["bn1_mean"] = 0.1 * jax.random.normal(ks[4], (in_c,), dtype)
    p["bn1_var"] = jnp.abs(jax.random.normal(ks[5], (in_c,), dtype)) + 0.5

    p["w2"] = jax.random.normal(ks[6], (3, 3, in_c, in_c), dtype) * 0.1
    p["b2"] = jax.random.normal(ks[7], (in_c,), dtype) * 0.1
    p["bn2_gamma"] = 1.0 + 0.1 * jax.random.normal(ks[8], (in_c,), dtype)
    p["bn2_beta"] = 0.1 * jax.random.normal(ks[9], (in_c,), dtype)
    p["bn2_mean"] = jnp.zeros((in_c,), dtype)
    p["bn2_var"] = jnp.ones((in_c,), dtype)

    k3a, k3b = jax.random.split(ks[0])
    p["w3"] = jax.random.normal(k3a, (in_c, out_c), dtype) * 0.1
    p["b3"] = jax.random.normal(k3b, (out_c,), dtype) * 0.1
    return p


def _fold_bn_into_conv(w, conv_bias, gamma, beta, mean, var, eps=1e-5):
    """Fold eval-mode BatchNorm into the preceding conv's weight and bias."""
    scale = gamma / jnp.sqrt(var + eps)
    return w * scale[None, None, None, :], beta + (conv_bias - mean) * scale


def _tap_block_diag(w, W):
    """(3,3,Cin,Cout) -> (9, W*Cin, W*Cout) per-tap block-diag im2col weights.

    big[t, w'*Cin + ci, w*Cout + co] = w[ky_t, kx_t, ci, co] * delta(w', w)
    """
    kh, kw, Cin, Cout = w.shape
    wt = w.reshape(kh * kw, Cin, Cout)
    eye = jnp.eye(W, dtype=w.dtype)
    big = jnp.einsum("tio,wv->twivo", wt, eye)       # (t, w', ci, w, co)
    return big.reshape(kh * kw, W * Cin, W * Cout)


def _chan_block_diag(w3, W):
    """(Cin, Cout) 1x1-conv weight -> (W*Cin, W*Cout) block-diagonal matrix."""
    Cin, Cout = w3.shape
    eye = jnp.eye(W, dtype=w3.dtype)
    big = jnp.einsum("io,wv->wivo", w3, eye)         # (w', ci, w, co)
    return big.reshape(W * Cin, W * Cout)


def pack_params(params, W, eps=1e-5):
    """One-time packing (call at init, NOT per forward):
    BN folding into weights + block-diag im2col expansion + bias merge."""
    w1f, b1f = _fold_bn_into_conv(params["w1"], params["b1"],
                                  params["bn1_gamma"], params["bn1_beta"],
                                  params["bn1_mean"], params["bn1_var"], eps)
    w2f, b2f = _fold_bn_into_conv(params["w2"], params["b2"],
                                  params["bn2_gamma"], params["bn2_beta"],
                                  params["bn2_mean"], params["bn2_var"], eps)
    w12 = jnp.concatenate([_tap_block_diag(w1f, W),
                           _tap_block_diag(w2f, W)], axis=0)   # (18, WCin, WCin)
    w3 = _chan_block_diag(params["w3"], W)                      # (WCin, WCout)
    b12 = jnp.stack([jnp.tile(b1f, W), jnp.tile(b2f, W)], axis=0)   # (2, WCin)
    b3 = jnp.tile(params["b3"], W)[None, :]                         # (1, WCout)
    return {"w12": w12, "w3": w3, "b12": b12, "b3": b3}


@jax.jit
def block_type_c_forward(x_nchw, packed):
    """BlockTypeC forward; input/output NCHW (PyTorch convention)."""
    x = jnp.transpose(x_nchw, (0, 2, 3, 1))              # -> NHWC
    B, H, W, Cin = x.shape
    Cout = packed["b3"].shape[-1] // W
    x2d = x.reshape(B, H, W * Cin)                        # lane-packed layout
    out2d = fused_block_c_call(x2d, packed["w12"], packed["w3"],
                               packed["b12"], packed["b3"],
                               H=H, W=W, Cin=Cin, Cout=Cout, dil=DIL)
    out = out2d.reshape(B, H, W, Cout)
    return jnp.transpose(out, (0, 3, 1, 2))               # -> NCHW


# -----------------------------------------------------------------------------
# Pure-JAX reference (lax convs) for correctness check
# -----------------------------------------------------------------------------
def reference_forward(x_nchw, p, eps=1e-5):
    def conv(x, w, rhs_dil, pad):
        return lax.conv_general_dilated(
            x, w, window_strides=(1, 1), padding=[(pad, pad), (pad, pad)],
            rhs_dilation=(rhs_dil, rhs_dil),
            dimension_numbers=("NHWC", "HWIO", "NHWC"))

    x = jnp.transpose(x_nchw, (0, 2, 3, 1))
    y = conv(x, p["w1"], 5, 5) + p["b1"]
    y = (y - p["bn1_mean"]) / jnp.sqrt(p["bn1_var"] + eps) * p["bn1_gamma"] + p["bn1_beta"]
    y = jnp.maximum(y, 0.0)
    y = conv(y, p["w2"], 1, 1) + p["b2"]
    y = (y - p["bn2_mean"]) / jnp.sqrt(p["bn2_var"] + eps) * p["bn2_gamma"] + p["bn2_beta"]
    y = jnp.maximum(y, 0.0)
    y = jnp.einsum("bhwc,co->bhwo", y, p["w3"]) + p["b3"]
    return jnp.transpose(y, (0, 3, 1, 2))


# -----------------------------------------------------------------------------
if __name__ == "__main__":
    B, in_c, out_c, H, W = 2, 4, 8, 16, 16
    key = jax.random.PRNGKey(0)
    kx, kp = jax.random.split(key)
    x = jax.random.normal(kx, (B, in_c, H, W), jnp.float32)
    params = init_params(kp, in_c, out_c)

    # One-time weight packing (BN fold + im2col expansion), reused every call.
    packed = pack_params(params, W)

    out = block_type_c_forward(x, packed)
    out = jax.block_until_ready(out)

    ref = jax.block_until_ready(reference_forward(x, params))
    np.testing.assert_allclose(np.asarray(out), np.asarray(ref),
                               rtol=1e-4, atol=1e-4)
    assert out.shape == (B, out_c, H, W)
    print("KERNEL_OK")
</pallas_src>

<mosaic_0001>
module attributes {stable_mosaic.version = 11 : i64} {
  func.func @_fused_block_c_kernel(%arg0: i32, %arg1: memref<2x16x64xf32, #tpu.memory_space<vmem>>, %arg2: memref<18x64x64xf32, #tpu.memory_space<vmem>>, %arg3: memref<64x128xf32, #tpu.memory_space<vmem>>, %arg4: memref<2x64xf32, #tpu.memory_space<vmem>>, %arg5: memref<1x128xf32, #tpu.memory_space<vmem>>, %arg6: memref<2x16x128xf32, #tpu.memory_space<vmem>>, %arg7: memref<2x26x104xf32, #tpu.memory_space<vmem>>, %arg8: memref<2x18x72xf32, #tpu.memory_space<vmem>>) attributes {dimension_semantics = [#tpu.dimension_semantics<parallel>], iteration_bounds = array<i64: 1>, scalar_prefetch = 0 : i64, scratch_operands = 2 : i64, tpu.core_type = #tpu.core_type<tc>, window_params = [{transform_indices = @transform_0, window_bounds = array<i64: 2, 16, 64>}, {pipeline_mode = #tpu.pipeline_mode<synchronous>, transform_indices = @transform_1, window_bounds = array<i64: 18, 64, 64>}, {pipeline_mode = #tpu.pipeline_mode<synchronous>, transform_indices = @transform_2, window_bounds = array<i64: 64, 128>}, {pipeline_mode = #tpu.pipeline_mode<synchronous>, transform_indices = @transform_3, window_bounds = array<i64: 2, 64>}, {pipeline_mode = #tpu.pipeline_mode<synchronous>, transform_indices = @transform_4, window_bounds = array<i64: 1, 128>}, {transform_indices = @transform_5, window_bounds = array<i64: 2, 16, 128>}]} {
    %c0_i32 = arith.constant 0 : i32
    %0 = arith.cmpi eq, %arg0, %c0_i32 : i32
    %1 = arith.extui %0 : i1 to i32
    %c0_i32_0 = arith.constant 0 : i32
    %2 = arith.cmpi ne, %1, %c0_i32_0 : i32
    scf.if %2 {
      %cst_274 = arith.constant 0.000000e+00 : f32
      %273 = vector.broadcast %cst_274 : f32 to vector<2x26x104xf32>
      %c0_275 = arith.constant 0 : index
      %c0_276 = arith.constant 0 : index
      %c0_277 = arith.constant 0 : index
      %274 = vector.load %arg7[%c0_275, %c0_276, %c0_277] : memref<2x26x104xf32, #tpu.memory_space<vmem>>, vector<2x26x104xf32>
      tpu.vector_store %arg7[%c0_275, %c0_276, %c0_277], %273 {strides = array<i32>} : memref<2x26x104xf32, #tpu.memory_space<vmem>>, vector<2x26x104xf32>,
      %cst_278 = arith.constant 0.000000e+00 : f32
      %275 = vector.broadcast %cst_278 : f32 to vector<2x18x72xf32>
      %c0_279 = arith.constant 0 : index
      %c0_280 = arith.constant 0 : index
      %c0_281 = arith.constant 0 : index
      %276 = vector.load %arg8[%c0_279, %c0_280, %c0_281] : memref<2x18x72xf32, #tpu.memory_space<vmem>>, vector<2x18x72xf32>
      tpu.vector_store %arg8[%c0_279, %c0_280, %c0_281], %275 {strides = array<i32>} : memref<2x18x72xf32, #tpu.memory_space<vmem>>, vector<2x18x72xf32>,
    } else {
    }
    %c0 = arith.constant 0 : index
    %c0_1 = arith.constant 0 : index
    %3 = vector.load %arg4[%c0, %c0_1] : memref<2x64xf32, #tpu.memory_space<vmem>>, vector<2x64xf32>
    %4 = vector.extract_strided_slice %3 {offsets = [0, 0], sizes = [1, 64], strides = [1, 1]} : vector<2x64xf32> to vector<1x64xf32>
    %5 = vector.extract_strided_slice %3 {offsets = [1, 0], sizes = [1, 64], strides = [1, 1]} : vector<2x64xf32> to vector<1x64xf32>
    %c0_2 = arith.constant 0 : index
    %c0_3 = arith.constant 0 : index
    %6 = vector.load %arg5[%c0_2, %c0_3] : memref<1x128xf32, #tpu.memory_space<vmem>>, vector<1x128xf32>
    %c0_4 = arith.constant 0 : index
    %c0_5 = arith.constant 0 : index
    %c0_6 = arith.constant 0 : index
    %7 = vector.load %arg1[%c0_4, %c0_5, %c0_6] : memref<2x16x64xf32, #tpu.memory_space<vmem>>, vector<1x16x64xf32>
    %8 = vector.shape_cast %7 : vector<1x16x64xf32> to vector<16x64xf32>
    %c0_7 = arith.constant 0 : index
    %c5 = arith.constant 5 : index
    %c20 = arith.constant 20 : index
    %9 = vector.load %arg7[%c0_7, %c5, %c20] : memref<2x26x104xf32, #tpu.memory_space<vmem>>, vector<1x16x64xf32>
    %10 = vector.shape_cast %9 : vector<1x16x64xf32> to vector<16x64xf32>
    %11 = vector.shape_cast %8 : vector<16x64xf32> to vector<1x16x64xf32>
    tpu.vector_store %arg7[%c0_7, %c5, %c20], %11 {strides = array<i32>} : memref<2x26x104xf32, #tpu.memory_space<vmem>>, vector<1x16x64xf32>,
    %cst = arith.constant 0.000000e+00 : f32
    %12 = vector.broadcast %cst : f32 to vector<16x64xf32>
    %c0_8 = arith.constant 0 : index
    %c0_9 = arith.constant 0 : index
    %c0_10 = arith.constant 0 : index
    %13 = vector.load %arg7[%c0_8, %c0_9, %c0_10] : memref<2x26x104xf32, #tpu.memory_space<vmem>>, vector<1x16x64xf32>
    %14 = vector.shape_cast %13 : vector<1x16x64xf32> to vector<16x64xf32>
    %c0_11 = arith.constant 0 : index
    %c0_12 = arith.constant 0 : index
    %c0_13 = arith.constant 0 : index
    %15 = vector.load %arg2[%c0_11, %c0_12, %c0_13] : memref<18x64x64xf32, #tpu.memory_space<vmem>>, vector<1x64x64xf32>
    %16 = vector.shape_cast %15 : vector<1x64x64xf32> to vector<64x64xf32>
    %cst_14 = arith.constant dense<0.000000e+00> : vector<16x64xf32>
    %17 = tpu.matmul %14, %16, %cst_14 {dimension_numbers = #tpu.dot_dimension_numbers<[1], [0], [0], [1], [0, 0, 1, 1], [], []>} : vector<16x64xf32>, vector<64x64xf32>, vector<16x64xf32> -> vector<16x64xf32>
    %18 = arith.addf %12, %17 : vector<16x64xf32>
    %c0_15 = arith.constant 0 : index
    %c0_16 = arith.constant 0 : index
    %c20_17 = arith.constant 20 : index
    %19 = vector.load %arg7[%c0_15, %c0_16, %c20_17] : memref<2x26x104xf32, #tpu.memory_space<vmem>>, vector<1x16x64xf32>
    %20 = vector.shape_cast %19 : vector<1x16x64xf32> to vector<16x64xf32>
    %c1 = arith.constant 1 : index
    %c0_18 = arith.constant 0 : index
    %c0_19 = arith.constant 0 : index
    %21 = vector.load %arg2[%c1, %c0_18, %c0_19] : memref<18x64x64xf32, #tpu.memory_space<vmem>>, vector<1x64x64xf32>
    %22 = vector.shape_cast %21 : vector<1x64x64xf32> to vector<64x64xf32>
    %cst_20 = arith.constant dense<0.000000e+00> : vector<16x64xf32>
    %23 = tpu.matmul %20, %22, %cst_20 {dimension_numbers = #tpu.dot_dimension_numbers<[1], [0], [0], [1], [0, 0, 1, 1], [], []>} : vector<16x64xf32>, vector<64x64xf32>, vector<16x64xf32> -> vector<16x64xf32>
    %24 = arith.addf %18, %23 : vector<16x64xf32>
    %c0_21 = arith.constant 0 : index
    %c0_22 = arith.constant 0 : index
    %c40 = arith.constant 40 : index
    %25 = vector.load %arg7[%c0_21, %c0_22, %c40] : memref<2x26x104xf32, #tpu.memory_space<vmem>>, vector<1x16x64xf32>
    %26 = vector.shape_cast %25 : vector<1x16x64xf32> to vector<16x64xf32>
    %c2 = arith.constant 2 : index
    %c0_23 = arith.constant 0 : index
    %c0_24 = arith.constant 0 : index
    %27 = vector.load %arg2[%c2, %c0_23, %c0_24] : memref<18x64x64xf32, #tpu.memory_space<vmem>>, vector<1x64x64xf32>
    %28 = vector.shape_cast %27 : vector<1x64x64xf32> to vector<64x64xf32>
    %cst_25 = arith.constant dense<0.000000e+00> : vector<16x64xf32>
    %29 = tpu.matmul %26, %28, %cst_25 {dimension_numbers = #tpu.dot_dimension_numbers<[1], [0], [0], [1], [0, 0, 1, 1], [], []>} : vector<16x64xf32>, vector<64x64xf32>, vector<16x64xf32> -> vector<16x64xf32>
    %30 = arith.addf %24, %29 : vector<16x64xf32>
    %c0_26 = arith.constant 0 : index
    %c5_27 = arith.constant 5 : index
    %c0_28 = arith.constant 0 : index
    %31 = vector.load %arg7[%c0_26, %c5_27, %c0_28] : memref<2x26x104xf32, #tpu.memory_space<vmem>>, vector<1x16x64xf32>
    %32 = vector.shape_cast %31 : vector<1x16x64xf32> to vector<16x64xf32>
    %c3 = arith.constant 3 : index
    %c0_29 = arith.constant 0 : index
    %c0_30 = arith.constant 0 : index
    %33 = vector.load %arg2[%c3, %c0_29, %c0_30] : memref<18x64x64xf32, #tpu.memory_space<vmem>>, vector<1x64x64xf32>
    %34 = vector.shape_cast %33 : vector<1x64x64xf32> to vector<64x64xf32>
    %cst_31 = arith.constant dense<0.000000e+00> : vector<16x64xf32>
    %35 = tpu.matmul %32, %34, %cst_31 {dimension_numbers = #tpu.dot_dimension_numbers<[1], [0], [0], [1], [0, 0, 1, 1], [], []>} : vector<16x64xf32>, vector<64x64xf32>, vector<16x64xf32> -> vector<16x64xf32>
    %36 = arith.addf %30, %35 : vector<16x64xf32>
    %c0_32 = arith.constant 0 : index
    %c5_33 = arith.constant 5 : index
    %c20_34 = arith.constant 20 : index
    %37 = vector.load %arg7[%c0_32, %c5_33, %c20_34] : memref<2x26x104xf32, #tpu.memory_space<vmem>>, vector<1x16x64xf32>
    %38 = vector.shape_cast %37 : vector<1x16x64xf32> to vector<16x64xf32>
    %c4 = arith.constant 4 : index
    %c0_35 = arith.constant 0 : index
    %c0_36 = arith.constant 0 : index
    %39 = vector.load %arg2[%c4, %c0_35, %c0_36] : memref<18x64x64xf32, #tpu.memory_space<vmem>>, vector<1x64x64xf32>
    %40 = vector.shape_cast %39 : vector<1x64x64xf32> to vector<64x64xf32>
    %cst_37 = arith.constant dense<0.000000e+00> : vector<16x64xf32>
    %41 = tpu.matmul %38, %40, %cst_37 {dimension_numbers = #tpu.dot_dimension_numbers<[1], [0], [0], [1], [0, 0, 1, 1], [], []>} : vector<16x64xf32>, vector<64x64xf32>, vector<16x64xf32> -> vector<16x64xf32>
    %42 = arith.addf %36, %41 : vector<16x64xf32>
    %c0_38 = arith.constant 0 : index
    %c5_39 = arith.constant 5 : index
    %c40_40 = arith.constant 40 : index
    %43 = vector.load %arg7[%c0_38, %c5_39, %c40_40] : memref<2x26x104xf32, #tpu.memory_space<vmem>>, vector<1x16x64xf32>
    %44 = vector.shape_cast %43 : vector<1x16x64xf32> to vector<16x64xf32>
    %c5_41 = arith.constant 5 : index
    %c0_42 = arith.constant 0 : index
    %c0_43 = arith.constant 0 : index
    %45 = vector.load %arg2[%c5_41, %c0_42, %c0_43] : memref<18x64x64xf32, #tpu.memory_space<vmem>>, vector<1x64x64xf32>
    %46 = vector.shape_cast %45 : vector<1x64x64xf32> to vector<64x64xf32>
    %cst_44 = arith.constant dense<0.000000e+00> : vector<16x64xf32>
    %47 = tpu.matmul %44, %46, %cst_44 {dimension_numbers = #tpu.dot_dimension_numbers<[1], [0], [0], [1], [0, 0, 1, 1], [], []>} : vector<16x64xf32>, vector<64x64xf32>, vector<16x64xf32> -> vector<16x64xf32>
    %48 = arith.addf %42, %47 : vector<16x64xf32>
    %c0_45 = arith.constant 0 : index
    %c10 = arith.constant 10 : index
    %c0_46 = arith.constant 0 : index
    %49 = vector.load %arg7[%c0_45, %c10, %c0_46] : memref<2x26x104xf32, #tpu.memory_space<vmem>>, vector<1x16x64xf32>
    %50 = vector.shape_cast %49 : vector<1x16x64xf32> to vector<16x64xf32>
    %c6 = arith.constant 6 : index
    %c0_47 = arith.constant 0 : index
    %c0_48 = arith.constant 0 : index
    %51 = vector.load %arg2[%c6, %c0_47, %c0_48] : memref<18x64x64xf32, #tpu.memory_space<vmem>>, vector<1x64x64xf32>
    %52 = vector.shape_cast %51 : vector<1x64x64xf32> to vector<64x64xf32>
    %cst_49 = arith.constant dense<0.000000e+00> : vector<16x64xf32>
    %53 = tpu.matmul %50, %52, %cst_49 {dimension_numbers = #tpu.dot_dimension_numbers<[1], [0], [0], [1], [0, 0, 1, 1], [], []>} : vector<16x64xf32>, vector<64x64xf32>, vector<16x64xf32> -> vector<16x64xf32>
    %54 = arith.addf %48, %53 : vector<16x64xf32>
    %c0_50 = arith.constant 0 : index
    %c10_51 = arith.constant 10 : index
    %c20_52 = arith.constant 20 : index
    %55 = vector.load %arg7[%c0_50, %c10_51, %c20_52] : memref<2x26x104xf32, #tpu.memory_space<vmem>>, vector<1x16x64xf32>
    %56 = vector.shape_cast %55 : vector<1x16x64xf32> to vector<16x64xf32>
    %c7 = arith.constant 7 : index
    %c0_53 = arith.constant 0 : index
    %c0_54 = arith.constant 0 : index
    %57 = vector.load %arg2[%c7, %c0_53, %c0_54] : memref<18x64x64xf32, #tpu.memory_space<vmem>>, vector<1x64x64xf32>
    %58 = vector.shape_cast %57 : vector<1x64x64xf32> to vector<64x64xf32>
    %cst_55 = arith.constant dense<0.000000e+00> : vector<16x64xf32>
    %59 = tpu.matmul %56, %58, %cst_55 {dimension_numbers = #tpu.dot_dimension_numbers<[1], [0], [0], [1], [0, 0, 1, 1], [], []>} : vector<16x64xf32>, vector<64x64xf32>, vector<16x64xf32> -> vector<16x64xf32>
    %60 = arith.addf %54, %59 : vector<16x64xf32>
    %c0_56 = arith.constant 0 : index
    %c10_57 = arith.constant 10 : index
    %c40_58 = arith.constant 40 : index
    %61 = vector.load %arg7[%c0_56, %c10_57, %c40_58] : memref<2x26x104xf32, #tpu.memory_space<vmem>>, vector<1x16x64xf32>
    %62 = vector.shape_cast %61 : vector<1x16x64xf32> to vector<16x64xf32>
    %c8 = arith.constant 8 : index
    %c0_59 = arith.constant 0 : index
    %c0_60 = arith.constant 0 : index
    %63 = vector.load %arg2[%c8, %c0_59, %c0_60] : memref<18x64x64xf32, #tpu.memory_space<vmem>>, vector<1x64x64xf32>
    %64 = vector.shape_cast %63 : vector<1x64x64xf32> to vector<64x64xf32>
    %cst_61 = arith.constant dense<0.000000e+00> : vector<16x64xf32>
    %65 = tpu.matmul %62, %64, %cst_61 {dimension_numbers = #tpu.dot_dimension_numbers<[1], [0], [0], [1], [0, 0, 1, 1], [], []>} : vector<16x64xf32>, vector<64x64xf32>, vector<16x64xf32> -> vector<16x64xf32>
    %66 = arith.addf %60, %65 : vector<16x64xf32>
    %67 = vector.broadcast %4 : vector<1x64xf32> to vector<16x64xf32>
    %68 = arith.addf %66, %67 : vector<16x64xf32>
    %cst_62 = arith.constant 0.000000e+00 : f32
    %69 = vector.broadcast %cst_62 : f32 to vector<16x64xf32>
    %70 = arith.maximumf %68, %69 : vector<16x64xf32>
    %c0_63 = arith.constant 0 : index
    %c1_64 = arith.constant 1 : index
    %c4_65 = arith.constant 4 : index
    %71 = vector.load %arg8[%c0_63, %c1_64, %c4_65] : memref<2x18x72xf32, #tpu.memory_space<vmem>>, vector<1x16x64xf32>
    %72 = vector.shape_cast %71 : vector<1x16x64xf32> to vector<16x64xf32>
    %73 = vector.shape_cast %70 : vector<16x64xf32> to vector<1x16x64xf32>
    tpu.vector_store %arg8[%c0_63, %c1_64, %c4_65], %73 {strides = array<i32>} : memref<2x18x72xf32, #tpu.memory_space<vmem>>, vector<1x16x64xf32>,
    %cst_66 = arith.constant 0.000000e+00 : f32
    %74 = vector.broadcast %cst_66 : f32 to vector<16x64xf32>
    %c0_67 = arith.constant 0 : index
    %c0_68 = arith.constant 0 : index
    %c0_69 = arith.constant 0 : index
    %75 = vector.load %arg8[%c0_67, %c0_68, %c0_69] : memref<2x18x72xf32, #tpu.memory_space<vmem>>, vector<1x16x64xf32>
    %76 = vector.shape_cast %75 : vector<1x16x64xf32> to vector<16x64xf32>
    %c9 = arith.constant 9 : index
    %c0_70 = arith.constant 0 : index
    %c0_71 = arith.constant 0 : index
    %77 = vector.load %arg2[%c9, %c0_70, %c0_71] : memref<18x64x64xf32, #tpu.memory_space<vmem>>, vector<1x64x64xf32>
    %78 = vector.shape_cast %77 : vector<1x64x64xf32> to vector<64x64xf32>
    %cst_72 = arith.constant dense<0.000000e+00> : vector<16x64xf32>
    %79 = tpu.matmul %76, %78, %cst_72 {dimension_numbers = #tpu.dot_dimension_numbers<[1], [0], [0], [1], [0, 0, 1, 1], [], []>} : vector<16x64xf32>, vector<64x64xf32>, vector<16x64xf32> -> vector<16x64xf32>
    %80 = arith.addf %74, %79 : vector<16x64xf32>
    %c0_73 = arith.constant 0 : index
    %c0_74 = arith.constant 0 : index
    %c4_75 = arith.constant 4 : index
    %81 = vector.load %arg8[%c0_73, %c0_74, %c4_75] : memref<2x18x72xf32, #tpu.memory_space<vmem>>, vector<1x16x64xf32>
    %82 = vector.shape_cast %81 : vector<1x16x64xf32> to vector<16x64xf32>
    %c10_76 = arith.constant 10 : index
    %c0_77 = arith.constant 0 : index
    %c0_78 = arith.constant 0 : index
    %83 = vector.load %arg2[%c10_76, %c0_77, %c0_78] : memref<18x64x64xf32, #tpu.memory_space<vmem>>, vector<1x64x64xf32>
    %84 = vector.shape_cast %83 : vector<1x64x64xf32> to vector<64x64xf32>
    %cst_79 = arith.constant dense<0.000000e+00> : vector<16x64xf32>
    %85 = tpu.matmul %82, %84, %cst_79 {dimension_numbers = #tpu.dot_dimension_numbers<[1], [0], [0], [1], [0, 0, 1, 1], [], []>} : vector<16x64xf32>, vector<64x64xf32>, vector<16x64xf32> -> vector<16x64xf32>
    %86 = arith.addf %80, %85 : vector<16x64xf32>
    %c0_80 = arith.constant 0 : index
    %c0_81 = arith.constant 0 : index
    %c8_82 = arith.constant 8 : index
    %87 = vector.load %arg8[%c0_80, %c0_81, %c8_82] : memref<2x18x72xf32, #tpu.memory_space<vmem>>, vector<1x16x64xf32>
    %88 = vector.shape_cast %87 : vector<1x16x64xf32> to vector<16x64xf32>
    %c11 = arith.constant 11 : index
    %c0_83 = arith.constant 0 : index
    %c0_84 = arith.constant 0 : index
    %89 = vector.load %arg2[%c11, %c0_83, %c0_84] : memref<18x64x64xf32, #tpu.memory_space<vmem>>, vector<1x64x64xf32>
    %90 = vector.shape_cast %89 : vector<1x64x64xf32> to vector<64x64xf32>
    %cst_85 = arith.constant dense<0.000000e+00> : vector<16x64xf32>
    %91 = tpu.matmul %88, %90, %cst_85 {dimension_numbers = #tpu.dot_dimension_numbers<[1], [0], [0], [1], [0, 0, 1, 1], [], []>} : vector<16x64xf32>, vector<64x64xf32>, vector<16x64xf32> -> vector<16x64xf32>
    %92 = arith.addf %86, %91 : vector<16x64xf32>
    %c0_86 = arith.constant 0 : index
    %c1_87 = arith.constant 1 : index
    %c0_88 = arith.constant 0 : index
    %93 = vector.load %arg8[%c0_86, %c1_87, %c0_88] : memref<2x18x72xf32, #tpu.memory_space<vmem>>, vector<1x16x64xf32>
    %94 = vector.shape_cast %93 : vector<1x16x64xf32> to vector<16x64xf32>
    %c12 = arith.constant 12 : index
    %c0_89 = arith.constant 0 : index
    %c0_90 = arith.constant 0 : index
    %95 = vector.load %arg2[%c12, %c0_89, %c0_90] : memref<18x64x64xf32, #tpu.memory_space<vmem>>, vector<1x64x64xf32>
    %96 = vector.shape_cast %95 : vector<1x64x64xf32> to vector<64x64xf32>
    %cst_91 = arith.constant dense<0.000000e+00> : vector<16x64xf32>
    %97 = tpu.matmul %94, %96, %cst_91 {dimension_numbers = #tpu.dot_dimension_numbers<[1], [0], [0], [1], [0, 0, 1, 1], [], []>} : vector<16x64xf32>, vector<64x64xf32>, vector<16x64xf32> -> vector<16x64xf32>
    %98 = arith.addf %92, %97 : vector<16x64xf32>
    %c0_92 = arith.constant 0 : index
    %c1_93 = arith.constant 1 : index
    %c4_94 = arith.constant 4 : index
    %99 = vector.load %arg8[%c0_92, %c1_93, %c4_94] : memref<2x18x72xf32, #tpu.memory_space<vmem>>, vector<1x16x64xf32>
    %100 = vector.shape_cast %99 : vector<1x16x64xf32> to vector<16x64xf32>
    %c13 = arith.constant 13 : index
    %c0_95 = arith.constant 0 : index
    %c0_96 = arith.constant 0 : index
    %101 = vector.load %arg2[%c13, %c0_95, %c0_96] : memref<18x64x64xf32, #tpu.memory_space<vmem>>, vector<1x64x64xf32>
    %102 = vector.shape_cast %101 : vector<1x64x64xf32> to vector<64x64xf32>
    %cst_97 = arith.constant dense<0.000000e+00> : vector<16x64xf32>
    %103 = tpu.matmul %100, %102, %cst_97 {dimension_numbers = #tpu.dot_dimension_numbers<[1], [0], [0], [1], [0, 0, 1, 1], [], []>} : vector<16x64xf32>, vector<64x64xf32>, vector<16x64xf32> -> vector<16x64xf32>
    %104 = arith.addf %98, %103 : vector<16x64xf32>
    %c0_98 = arith.constant 0 : index
    %c1_99 = arith.constant 1 : index
    %c8_100 = arith.constant 8 : index
    %105 = vector.load %arg8[%c0_98, %c1_99, %c8_100] : memref<2x18x72xf32, #tpu.memory_space<vmem>>, vector<1x16x64xf32>
    %106 = vector.shape_cast %105 : vector<1x16x64xf32> to vector<16x64xf32>
    %c14 = arith.constant 14 : index
    %c0_101 = arith.constant 0 : index
    %c0_102 = arith.constant 0 : index
    %107 = vector.load %arg2[%c14, %c0_101, %c0_102] : memref<18x64x64xf32, #tpu.memory_space<vmem>>, vector<1x64x64xf32>
    %108 = vector.shape_cast %107 : vector<1x64x64xf32> to vector<64x64xf32>
    %cst_103 = arith.constant dense<0.000000e+00> : vector<16x64xf32>
    %109 = tpu.matmul %106, %108, %cst_103 {dimension_numbers = #tpu.dot_dimension_numbers<[1], [0], [0], [1], [0, 0, 1, 1], [], []>} : vector<16x64xf32>, vector<64x64xf32>, vector<16x64xf32> -> vector<16x64xf32>
    %110 = arith.addf %104, %109 : vector<16x64xf32>
    %c0_104 = arith.constant 0 : index
    %c2_105 = arith.constant 2 : index
    %c0_106 = arith.constant 0 : index
    %111 = vector.load %arg8[%c0_104, %c2_105, %c0_106] : memref<2x18x72xf32, #tpu.memory_space<vmem>>, vector<1x16x64xf32>
    %112 = vector.shape_cast %111 : vector<1x16x64xf32> to vector<16x64xf32>
    %c15 = arith.constant 15 : index
    %c0_107 = arith.constant 0 : index
    %c0_108 = arith.constant 0 : index
    %113 = vector.load %arg2[%c15, %c0_107, %c0_108] : memref<18x64x64xf32, #tpu.memory_space<vmem>>, vector<1x64x64xf32>
    %114 = vector.shape_cast %113 : vector<1x64x64xf32> to vector<64x64xf32>
    %cst_109 = arith.constant dense<0.000000e+00> : vector<16x64xf32>
    %115 = tpu.matmul %112, %114, %cst_109 {dimension_numbers = #tpu.dot_dimension_numbers<[1], [0], [0], [1], [0, 0, 1, 1], [], []>} : vector<16x64xf32>, vector<64x64xf32>, vector<16x64xf32> -> vector<16x64xf32>
    %116 = arith.addf %110, %115 : vector<16x64xf32>
    %c0_110 = arith.constant 0 : index
    %c2_111 = arith.constant 2 : index
    %c4_112 = arith.constant 4 : index
    %117 = vector.load %arg8[%c0_110, %c2_111, %c4_112] : memref<2x18x72xf32, #tpu.memory_space<vmem>>, vector<1x16x64xf32>
    %118 = vector.shape_cast %117 : vector<1x16x64xf32> to vector<16x64xf32>
    %c16 = arith.constant 16 : index
    %c0_113 = arith.constant 0 : index
    %c0_114 = arith.constant 0 : index
    %119 = vector.load %arg2[%c16, %c0_113, %c0_114] : memref<18x64x64xf32, #tpu.memory_space<vmem>>, vector<1x64x64xf32>
    %120 = vector.shape_cast %119 : vector<1x64x64xf32> to vector<64x64xf32>
    %cst_115 = arith.constant dense<0.000000e+00> : vector<16x64xf32>
    %121 = tpu.matmul %118, %120, %cst_115 {dimension_numbers = #tpu.dot_dimension_numbers<[1], [0], [0], [1], [0, 0, 1, 1], [], []>} : vector<16x64xf32>, vector<64x64xf32>, vector<16x64xf32> -> vector<16x64xf32>
    %122 = arith.addf %116, %121 : vector<16x64xf32>
    %c0_116 = arith.constant 0 : index
    %c2_117 = arith.constant 2 : index
    %c8_118 = arith.constant 8 : index
    %123 = vector.load %arg8[%c0_116, %c2_117, %c8_118] : memref<2x18x72xf32, #tpu.memory_space<vmem>>, vector<1x16x64xf32>
    %124 = vector.shape_cast %123 : vector<1x16x64xf32> to vector<16x64xf32>
    %c17 = arith.constant 17 : index
    %c0_119 = arith.constant 0 : index
    %c0_120 = arith.constant 0 : index
    %125 = vector.load %arg2[%c17, %c0_119, %c0_120] : memref<18x64x64xf32, #tpu.memory_space<vmem>>, vector<1x64x64xf32>
    %126 = vector.shape_cast %125 : vector<1x64x64xf32> to vector<64x64xf32>
    %cst_121 = arith.constant dense<0.000000e+00> : vector<16x64xf32>
    %127 = tpu.matmul %124, %126, %cst_121 {dimension_numbers = #tpu.dot_dimension_numbers<[1], [0], [0], [1], [0, 0, 1, 1], [], []>} : vector<16x64xf32>, vector<64x64xf32>, vector<16x64xf32> -> vector<16x64xf32>
    %128 = arith.addf %122, %127 : vector<16x64xf32>
    %129 = vector.broadcast %5 : vector<1x64xf32> to vector<16x64xf32>
    %130 = arith.addf %128, %129 : vector<16x64xf32>
    %cst_122 = arith.constant 0.000000e+00 : f32
    %131 = vector.broadcast %cst_122 : f32 to vector<16x64xf32>
    %132 = arith.maximumf %130, %131 : vector<16x64xf32>
    %c0_123 = arith.constant 0 : index
    %c0_124 = arith.constant 0 : index
    %133 = vector.load %arg3[%c0_123, %c0_124] : memref<64x128xf32, #tpu.memory_space<vmem>>, vector<64x128xf32>
    %cst_125 = arith.constant dense<0.000000e+00> : vector<16x128xf32>
    %134 = tpu.matmul %132, %133, %cst_125 {dimension_numbers = #tpu.dot_dimension_numbers<[1], [0], [0], [1], [0, 0, 1, 1], [], []>} : vector<16x64xf32>, vector<64x128xf32>, vector<16x128xf32> -> vector<16x128xf32>
    %135 = vector.broadcast %6 : vector<1x128xf32> to vector<16x128xf32>
    %136 = arith.addf %134, %135 : vector<16x128xf32>
    %c0_126 = arith.constant 0 : index
    %c0_127 = arith.constant 0 : index
    %c0_128 = arith.constant 0 : index
    %137 = vector.load %arg6[%c0_126, %c0_127, %c0_128] : memref<2x16x128xf32, #tpu.memory_space<vmem>>, vector<1x16x128xf32>
    %138 = vector.shape_cast %137 : vector<1x16x128xf32> to vector<16x128xf32>
    %139 = vector.shape_cast %136 : vector<16x128xf32> to vector<1x16x128xf32>
    tpu.vector_store %arg6[%c0_126, %c0_127, %c0_128], %139 {strides = array<i32>} : memref<2x16x128xf32, #tpu.memory_space<vmem>>, vector<1x16x128xf32>,
    %c1_129 = arith.constant 1 : index
    %c0_130 = arith.constant 0 : index
    %c0_131 = arith.constant 0 : index
    %140 = vector.load %arg1[%c1_129, %c0_130, %c0_131] : memref<2x16x64xf32, #tpu.memory_space<vmem>>, vector<1x16x64xf32>
    %141 = vector.shape_cast %140 : vector<1x16x64xf32> to vector<16x64xf32>
    %c1_132 = arith.constant 1 : index
    %c5_133 = arith.constant 5 : index
    %c20_134 = arith.constant 20 : index
    %142 = vector.load %arg7[%c1_132, %c5_133, %c20_134] : memref<2x26x104xf32, #tpu.memory_space<vmem>>, vector<1x16x64xf32>
    %143 = vector.shape_cast %142 : vector<1x16x64xf32> to vector<16x64xf32>
    %144 = vector.shape_cast %141 : vector<16x64xf32> to vector<1x16x64xf32>
    tpu.vector_store %arg7[%c1_132, %c5_133, %c20_134], %144 {strides = array<i32>} : memref<2x26x104xf32, #tpu.memory_space<vmem>>, vector<1x16x64xf32>,
    %cst_135 = arith.constant 0.000000e+00 : f32
    %145 = vector.broadcast %cst_135 : f32 to vector<16x64xf32>
    %c1_136 = arith.constant 1 : index
    %c0_137 = arith.constant 0 : index
    %c0_138 = arith.constant 0 : index
    %146 = vector.load %arg7[%c1_136, %c0_137, %c0_138] : memref<2x26x104xf32, #tpu.memory_space<vmem>>, vector<1x16x64xf32>
    %147 = vector.shape_cast %146 : vector<1x16x64xf32> to vector<16x64xf32>
    %c0_139 = arith.constant 0 : index
    %c0_140 = arith.constant 0 : index
    %c0_141 = arith.constant 0 : index
    %148 = vector.load %arg2[%c0_139, %c0_140, %c0_141] : memref<18x64x64xf32, #tpu.memory_space<vmem>>, vector<1x64x64xf32>
    %149 = vector.shape_cast %148 : vector<1x64x64xf32> to vector<64x64xf32>
    %cst_142 = arith.constant dense<0.000000e+00> : vector<16x64xf32>
    %150 = tpu.matmul %147, %149, %cst_142 {dimension_numbers = #tpu.dot_dimension_numbers<[1], [0], [0], [1], [0, 0, 1, 1], [], []>} : vector<16x64xf32>, vector<64x64xf32>, vector<16x64xf32> -> vector<16x64xf32>
    %151 = arith.addf %145, %150 : vector<16x64xf32>
    %c1_143 = arith.constant 1 : index
    %c0_144 = arith.constant 0 : index
    %c20_145 = arith.constant 20 : index
    %152 = vector.load %arg7[%c1_143, %c0_144, %c20_145] : memref<2x26x104xf32, #tpu.memory_space<vmem>>, vector<1x16x64xf32>
    %153 = vector.shape_cast %152 : vector<1x16x64xf32> to vector<16x64xf32>
    %c1_146 = arith.constant 1 : index
    %c0_147 = arith.constant 0 : index
    %c0_148 = arith.constant 0 : index
    %154 = vector.load %arg2[%c1_146, %c0_147, %c0_148] : memref<18x64x64xf32, #tpu.memory_space<vmem>>, vector<1x64x64xf32>
    %155 = vector.shape_cast %154 : vector<1x64x64xf32> to vector<64x64xf32>
    %cst_149 = arith.constant dense<0.000000e+00> : vector<16x64xf32>
    %156 = tpu.matmul %153, %155, %cst_149 {dimension_numbers = #tpu.dot_dimension_numbers<[1], [0], [0], [1], [0, 0, 1, 1], [], []>} : vector<16x64xf32>, vector<64x64xf32>, vector<16x64xf32> -> vector<16x64xf32>
    %157 = arith.addf %151, %156 : vector<16x64xf32>
    %c1_150 = arith.constant 1 : index
    %c0_151 = arith.constant 0 : index
    %c40_152 = arith.constant 40 : index
    %158 = vector.load %arg7[%c1_150, %c0_151, %c40_152] : memref<2x26x104xf32, #tpu.memory_space<vmem>>, vector<1x16x64xf32>
    %159 = vector.shape_cast %158 : vector<1x16x64xf32> to vector<16x64xf32>
    %c2_153 = arith.constant 2 : index
    %c0_154 = arith.constant 0 : index
    %c0_155 = arith.constant 0 : index
    %160 = vector.load %arg2[%c2_153, %c0_154, %c0_155] : memref<18x64x64xf32, #tpu.memory_space<vmem>>, vector<1x64x64xf32>
    %161 = vector.shape_cast %160 : vector<1x64x64xf32> to vector<64x64xf32>
    %cst_156 = arith.constant dense<0.000000e+00> : vector<16x64xf32>
    %162 = tpu.matmul %159, %161, %cst_156 {dimension_numbers = #tpu.dot_dimension_numbers<[1], [0], [0], [1], [0, 0, 1, 1], [], []>} : vector<16x64xf32>, vector<64x64xf32>, vector<16x64xf32> -> vector<16x64xf32>
    %163 = arith.addf %157, %162 : vector<16x64xf32>
    %c1_157 = arith.constant 1 : index
    %c5_158 = arith.constant 5 : index
    %c0_159 = arith.constant 0 : index
    %164 = vector.load %arg7[%c1_157, %c5_158, %c0_159] : memref<2x26x104xf32, #tpu.memory_space<vmem>>, vector<1x16x64xf32>
    %165 = vector.shape_cast %164 : vector<1x16x64xf32> to vector<16x64xf32>
    %c3_160 = arith.constant 3 : index
    %c0_161 = arith.constant 0 : index
    %c0_162 = arith.constant 0 : index
    %166 = vector.load %arg2[%c3_160, %c0_161, %c0_162] : memref<18x64x64xf32, #tpu.memory_space<vmem>>, vector<1x64x64xf32>
    %167 = vector.shape_cast %166 : vector<1x64x64xf32> to vector<64x64xf32>
    %cst_163 = arith.constant dense<0.000000e+00> : vector<16x64xf32>
    %168 = tpu.matmul %165, %167, %cst_163 {dimension_numbers = #tpu.dot_dimension_numbers<[1], [0], [0], [1], [0, 0, 1, 1], [], []>} : vector<16x64xf32>, vector<64x64xf32>, vector<16x64xf32> -> vector<16x64xf32>
    %169 = arith.addf %163, %168 : vector<16x64xf32>
    %c1_164 = arith.constant 1 : index
    %c5_165 = arith.constant 5 : index
    %c20_166 = arith.constant 20 : index
    %170 = vector.load %arg7[%c1_164, %c5_165, %c20_166] : memref<2x26x104xf32, #tpu.memory_space<vmem>>, vector<1x16x64xf32>
    %171 = vector.shape_cast %170 : vector<1x16x64xf32> to vector<16x64xf32>
    %c4_167 = arith.constant 4 : index
    %c0_168 = arith.constant 0 : index
    %c0_169 = arith.constant 0 : index
    %172 = vector.load %arg2[%c4_167, %c0_168, %c0_169] : memref<18x64x64xf32, #tpu.memory_space<vmem>>, vector<1x64x64xf32>
    %173 = vector.shape_cast %172 : vector<1x64x64xf32> to vector<64x64xf32>
    %cst_170 = arith.constant dense<0.000000e+00> : vector<16x64xf32>
    %174 = tpu.matmul %171, %173, %cst_170 {dimension_numbers = #tpu.dot_dimension_numbers<[1], [0], [0], [1], [0, 0, 1, 1], [], []>} : vector<16x64xf32>, vector<64x64xf32>, vector<16x64xf32> -> vector<16x64xf32>
    %175 = arith.addf %169, %174 : vector<16x64xf32>
    %c1_171 = arith.constant 1 : index
    %c5_172 = arith.constant 5 : index
    %c40_173 = arith.constant 40 : index
    %176 = vector.load %arg7[%c1_171, %c5_172, %c40_173] : memref<2x26x104xf32, #tpu.memory_space<vmem>>, vector<1x16x64xf32>
    %177 = vector.shape_cast %176 : vector<1x16x64xf32> to vector<16x64xf32>
    %c5_174 = arith.constant 5 : index
    %c0_175 = arith.constant 0 : index
    %c0_176 = arith.constant 0 : index
    %178 = vector.load %arg2[%c5_174, %c0_175, %c0_176] : memref<18x64x64xf32, #tpu.memory_space<vmem>>, vector<1x64x64xf32>
    %179 = vector.shape_cast %178 : vector<1x64x64xf32> to vector<64x64xf32>
    %cst_177 = arith.constant dense<0.000000e+00> : vector<16x64xf32>
    %180 = tpu.matmul %177, %179, %cst_177 {dimension_numbers = #tpu.dot_dimension_numbers<[1], [0], [0], [1], [0, 0, 1, 1], [], []>} : vector<16x64xf32>, vector<64x64xf32>, vector<16x64xf32> -> vector<16x64xf32>
    %181 = arith.addf %175, %180 : vector<16x64xf32>
    %c1_178 = arith.constant 1 : index
    %c10_179 = arith.constant 10 : index
    %c0_180 = arith.constant 0 : index
    %182 = vector.load %arg7[%c1_178, %c10_179, %c0_180] : memref<2x26x104xf32, #tpu.memory_space<vmem>>, vector<1x16x64xf32>
    %183 = vector.shape_cast %182 : vector<1x16x64xf32> to vector<16x64xf32>
    %c6_181 = arith.constant 6 : index
    %c0_182 = arith.constant 0 : index
    %c0_183 = arith.constant 0 : index
    %184 = vector.load %arg2[%c6_181, %c0_182, %c0_183] : memref<18x64x64xf32, #tpu.memory_space<vmem>>, vector<1x64x64xf32>
    %185 = vector.shape_cast %184 : vector<1x64x64xf32> to vector<64x64xf32>
    %cst_184 = arith.constant dense<0.000000e+00> : vector<16x64xf32>
    %186 = tpu.matmul %183, %185, %cst_184 {dimension_numbers = #tpu.dot_dimension_numbers<[1], [0], [0], [1], [0, 0, 1, 1], [], []>} : vector<16x64xf32>, vector<64x64xf32>, vector<16x64xf32> -> vector<16x64xf32>
    %187 = arith.addf %181, %186 : vector<16x64xf32>
    %c1_185 = arith.constant 1 : index
    %c10_186 = arith.constant 10 : index
    %c20_187 = arith.constant 20 : index
    %188 = vector.load %arg7[%c1_185, %c10_186, %c20_187] : memref<2x26x104xf32, #tpu.memory_space<vmem>>, vector<1x16x64xf32>
    %189 = vector.shape_cast %188 : vector<1x16x64xf32> to vector<16x64xf32>
    %c7_188 = arith.constant 7 : index
    %c0_189 = arith.constant 0 : index
    %c0_190 = arith.constant 0 : index
    %190 = vector.load %arg2[%c7_188, %c0_189, %c0_190] : memref<18x64x64xf32, #tpu.memory_space<vmem>>, vector<1x64x64xf32>
    %191 = vector.shape_cast %190 : vector<1x64x64xf32> to vector<64x64xf32>
    %cst_191 = arith.constant dense<0.000000e+00> : vector<16x64xf32>
    %192 = tpu.matmul %189, %191, %cst_191 {dimension_numbers = #tpu.dot_dimension_numbers<[1], [0], [0], [1], [0, 0, 1, 1], [], []>} : vector<16x64xf32>, vector<64x64xf32>, vector<16x64xf32> -> vector<16x64xf32>
    %193 = arith.addf %187, %192 : vector<16x64xf32>
    %c1_192 = arith.constant 1 : index
    %c10_193 = arith.constant 10 : index
    %c40_194 = arith.constant 40 : index
    %194 = vector.load %arg7[%c1_192, %c10_193, %c40_194] : memref<2x26x104xf32, #tpu.memory_space<vmem>>, vector<1x16x64xf32>
    %195 = vector.shape_cast %194 : vector<1x16x64xf32> to vector<16x64xf32>
    %c8_195 = arith.constant 8 : index
    %c0_196 = arith.constant 0 : index
    %c0_197 = arith.constant 0 : index
    %196 = vector.load %arg2[%c8_195, %c0_196, %c0_197] : memref<18x64x64xf32, #tpu.memory_space<vmem>>, vector<1x64x64xf32>
    %197 = vector.shape_cast %196 : vector<1x64x64xf32> to vector<64x64xf32>
    %cst_198 = arith.constant dense<0.000000e+00> : vector<16x64xf32>
    %198 = tpu.matmul %195, %197, %cst_198 {dimension_numbers = #tpu.dot_dimension_numbers<[1], [0], [0], [1], [0, 0, 1, 1], [], []>} : vector<16x64xf32>, vector<64x64xf32>, vector<16x64xf32> -> vector<16x64xf32>
    %199 = arith.addf %193, %198 : vector<16x64xf32>
    %200 = vector.broadcast %4 : vector<1x64xf32> to vector<16x64xf32>
    %201 = arith.addf %199, %200 : vector<16x64xf32>
    %cst_199 = arith.constant 0.000000e+00 : f32
    %202 = vector.broadcast %cst_199 : f32 to vector<16x64xf32>
    %203 = arith.maximumf %201, %202 : vector<16x64xf32>
    %c1_200 = arith.constant 1 : index
    %c1_201 = arith.constant 1 : index
    %c4_202 = arith.constant 4 : index
    %204 = vector.load %arg8[%c1_200, %c1_201, %c4_202] : memref<2x18x72xf32, #tpu.memory_space<vmem>>, vector<1x16x64xf32>
    %205 = vector.shape_cast %204 : vector<1x16x64xf32> to vector<16x64xf32>
    %206 = vector.shape_cast %203 : vector<16x64xf32> to vector<1x16x64xf32>
    tpu.vector_store %arg8[%c1_200, %c1_201, %c4_202], %206 {strides = array<i32>} : memref<2x18x72xf32, #tpu.memory_space<vmem>>, vector<1x16x64xf32>,
    %cst_203 = arith.constant 0.000000e+00 : f32
    %207 = vector.broadcast %cst_203 : f32 to vector<16x64xf32>
    %c1_204 = arith.constant 1 : index
    %c0_205 = arith.constant 0 : index
    %c0_206 = arith.constant 0 : index
    %208 = vector.load %arg8[%c1_204, %c0_205, %c0_206] : memref<2x18x72xf32, #tpu.memory_space<vmem>>, vector<1x16x64xf32>
    %209 = vector.shape_cast %208 : vector<1x16x64xf32> to vector<16x64xf32>
    %c9_207 = arith.constant 9 : index
    %c0_208 = arith.constant 0 : index
    %c0_209 = arith.constant 0 : index
    %210 = vector.load %arg2[%c9_207, %c0_208, %c0_209] : memref<18x64x64xf32, #tpu.memory_space<vmem>>, vector<1x64x64xf32>
    %211 = vector.shape_cast %210 : vector<1x64x64xf32> to vector<64x64xf32>
    %cst_210 = arith.constant dense<0.000000e+00> : vector<16x64xf32>
    %212 = tpu.matmul %209, %211, %cst_210 {dimension_numbers = #tpu.dot_dimension_numbers<[1], [0], [0], [1], [0, 0, 1, 1], [], []>} : vector<16x64xf32>, vector<64x64xf32>, vector<16x64xf32> -> vector<16x64xf32>
    %213 = arith.addf %207, %212 : vector<16x64xf32>
    %c1_211 = arith.constant 1 : index
    %c0_212 = arith.constant 0 : index
    %c4_213 = arith.constant 4 : index
    %214 = vector.load %arg8[%c1_211, %c0_212, %c4_213] : memref<2x18x72xf32, #tpu.memory_space<vmem>>, vector<1x16x64xf32>
    %215 = vector.shape_cast %214 : vector<1x16x64xf32> to vector<16x64xf32>
    %c10_214 = arith.constant 10 : index
    %c0_215 = arith.constant 0 : index
    %c0_216 = arith.constant 0 : index
    %216 = vector.load %arg2[%c10_214, %c0_215, %c0_216] : memref<18x64x64xf32, #tpu.memory_space<vmem>>, vector<1x64x64xf32>
    %217 = vector.shape_cast %216 : vector<1x64x64xf32> to vector<64x64xf32>
    %cst_217 = arith.constant dense<0.000000e+00> : vector<16x64xf32>
    %218 = tpu.matmul %215, %217, %cst_217 {dimension_numbers = #tpu.dot_dimension_numbers<[1], [0], [0], [1], [0, 0, 1, 1], [], []>} : vector<16x64xf32>, vector<64x64xf32>, vector<16x64xf32> -> vector<16x64xf32>
    %219 = arith.addf %213, %218 : vector<16x64xf32>
    %c1_218 = arith.constant 1 : index
    %c0_219 = arith.constant 0 : index
    %c8_220 = arith.constant 8 : index
    %220 = vector.load %arg8[%c1_218, %c0_219, %c8_220] : memref<2x18x72xf32, #tpu.memory_space<vmem>>, vector<1x16x64xf32>
    %221 = vector.shape_cast %220 : vector<1x16x64xf32> to vector<16x64xf32>
    %c11_221 = arith.constant 11 : index
    %c0_222 = arith.constant 0 : index
    %c0_223 = arith.constant 0 : index
    %222 = vector.load %arg2[%c11_221, %c0_222, %c0_223] : memref<18x64x64xf32, #tpu.memory_space<vmem>>, vector<1x64x64xf32>
    %223 = vector.shape_cast %222 : vector<1x64x64xf32> to vector<64x64xf32>
    %cst_224 = arith.constant dense<0.000000e+00> : vector<16x64xf32>
    %224 = tpu.matmul %221, %223, %cst_224 {dimension_numbers = #tpu.dot_dimension_numbers<[1], [0], [0], [1], [0, 0, 1, 1], [], []>} : vector<16x64xf32>, vector<64x64xf32>, vector<16x64xf32> -> vector<16x64xf32>
    %225 = arith.addf %219, %224 : vector<16x64xf32>
    %c1_225 = arith.constant 1 : index
    %c1_226 = arith.constant 1 : index
    %c0_227 = arith.constant 0 : index
    %226 = vector.load %arg8[%c1_225, %c1_226, %c0_227] : memref<2x18x72xf32, #tpu.memory_space<vmem>>, vector<1x16x64xf32>
    %227 = vector.shape_cast %226 : vector<1x16x64xf32> to vector<16x64xf32>
    %c12_228 = arith.constant 12 : index
    %c0_229 = arith.constant 0 : index
    %c0_230 = arith.constant 0 : index
    %228 = vector.load %arg2[%c12_228, %c0_229, %c0_230] : memref<18x64x64xf32, #tpu.memory_space<vmem>>, vector<1x64x64xf32>
    %229 = vector.shape_cast %228 : vector<1x64x64xf32> to vector<64x64xf32>
    %cst_231 = arith.constant dense<0.000000e+00> : vector<16x64xf32>
    %230 = tpu.matmul %227, %229, %cst_231 {dimension_numbers = #tpu.dot_dimension_numbers<[1], [0], [0], [1], [0, 0, 1, 1], [], []>} : vector<16x64xf32>, vector<64x64xf32>, vector<16x64xf32> -> vector<16x64xf32>
    %231 = arith.addf %225, %230 : vector<16x64xf32>
    %c1_232 = arith.constant 1 : index
    %c1_233 = arith.constant 1 : index
    %c4_234 = arith.constant 4 : index
    %232 = vector.load %arg8[%c1_232, %c1_233, %c4_234] : memref<2x18x72xf32, #tpu.memory_space<vmem>>, vector<1x16x64xf32>
    %233 = vector.shape_cast %232 : vector<1x16x64xf32> to vector<16x64xf32>
    %c13_235 = arith.constant 13 : index
    %c0_236 = arith.constant 0 : index
    %c0_237 = arith.constant 0 : index
    %234 = vector.load %arg2[%c13_235, %c0_236, %c0_237] : memref<18x64x64xf32, #tpu.memory_space<vmem>>, vector<1x64x64xf32>
    %235 = vector.shape_cast %234 : vector<1x64x64xf32> to vector<64x64xf32>
    %cst_238 = arith.constant dense<0.000000e+00> : vector<16x64xf32>
    %236 = tpu.matmul %233, %235, %cst_238 {dimension_numbers = #tpu.dot_dimension_numbers<[1], [0], [0], [1], [0, 0, 1, 1], [], []>} : vector<16x64xf32>, vector<64x64xf32>, vector<16x64xf32> -> vector<16x64xf32>
    %237 = arith.addf %231, %236 : vector<16x64xf32>
    %c1_239 = arith.constant 1 : index
    %c1_240 = arith.constant 1 : index
    %c8_241 = arith.constant 8 : index
    %238 = vector.load %arg8[%c1_239, %c1_240, %c8_241] : memref<2x18x72xf32, #tpu.memory_space<vmem>>, vector<1x16x64xf32>
    %239 = vector.shape_cast %238 : vector<1x16x64xf32> to vector<16x64xf32>
    %c14_242 = arith.constant 14 : index
    %c0_243 = arith.constant 0 : index
    %c0_244 = arith.constant 0 : index
    %240 = vector.load %arg2[%c14_242, %c0_243, %c0_244] : memref<18x64x64xf32, #tpu.memory_space<vmem>>, vector<1x64x64xf32>
    %241 = vector.shape_cast %240 : vector<1x64x64xf32> to vector<64x64xf32>
    %cst_245 = arith.constant dense<0.000000e+00> : vector<16x64xf32>
    %242 = tpu.matmul %239, %241, %cst_245 {dimension_numbers = #tpu.dot_dimension_numbers<[1], [0], [0], [1], [0, 0, 1, 1], [], []>} : vector<16x64xf32>, vector<64x64xf32>, vector<16x64xf32> -> vector<16x64xf32>
    %243 = arith.addf %237, %242 : vector<16x64xf32>
    %c1_246 = arith.constant 1 : index
    %c2_247 = arith.constant 2 : index
    %c0_248 = arith.constant 0 : index
    %244 = vector.load %arg8[%c1_246, %c2_247, %c0_248] : memref<2x18x72xf32, #tpu.memory_space<vmem>>, vector<1x16x64xf32>
    %245 = vector.shape_cast %244 : vector<1x16x64xf32> to vector<16x64xf32>
    %c15_249 = arith.constant 15 : index
    %c0_250 = arith.constant 0 : index
    %c0_251 = arith.constant 0 : index
    %246 = vector.load %arg2[%c15_249, %c0_250, %c0_251] : memref<18x64x64xf32, #tpu.memory_space<vmem>>, vector<1x64x64xf32>
    %247 = vector.shape_cast %246 : vector<1x64x64xf32> to vector<64x64xf32>
    %cst_252 = arith.constant dense<0.000000e+00> : vector<16x64xf32>
    %248 = tpu.matmul %245, %247, %cst_252 {dimension_numbers = #tpu.dot_dimension_numbers<[1], [0], [0], [1], [0, 0, 1, 1], [], []>} : vector<16x64xf32>, vector<64x64xf32>, vector<16x64xf32> -> vector<16x64xf32>
    %249 = arith.addf %243, %248 : vector<16x64xf32>
    %c1_253 = arith.constant 1 : index
    %c2_254 = arith.constant 2 : index
    %c4_255 = arith.constant 4 : index
    %250 = vector.load %arg8[%c1_253, %c2_254, %c4_255] : memref<2x18x72xf32, #tpu.memory_space<vmem>>, vector<1x16x64xf32>
    %251 = vector.shape_cast %250 : vector<1x16x64xf32> to vector<16x64xf32>
    %c16_256 = arith.constant 16 : index
    %c0_257 = arith.constant 0 : index
    %c0_258 = arith.constant 0 : index
    %252 = vector.load %arg2[%c16_256, %c0_257, %c0_258] : memref<18x64x64xf32, #tpu.memory_space<vmem>>, vector<1x64x64xf32>
    %253 = vector.shape_cast %252 : vector<1x64x64xf32> to vector<64x64xf32>
    %cst_259 = arith.constant dense<0.000000e+00> : vector<16x64xf32>
    %254 = tpu.matmul %251, %253, %cst_259 {dimension_numbers = #tpu.dot_dimension_numbers<[1], [0], [0], [1], [0, 0, 1, 1], [], []>} : vector<16x64xf32>, vector<64x64xf32>, vector<16x64xf32> -> vector<16x64xf32>
    %255 = arith.addf %249, %254 : vector<16x64xf32>
    %c1_260 = arith.constant 1 : index
    %c2_261 = arith.constant 2 : index
    %c8_262 = arith.constant 8 : index
    %256 = vector.load %arg8[%c1_260, %c2_261, %c8_262] : memref<2x18x72xf32, #tpu.memory_space<vmem>>, vector<1x16x64xf32>
    %257 = vector.shape_cast %256 : vector<1x16x64xf32> to vector<16x64xf32>
    %c17_263 = arith.constant 17 : index
    %c0_264 = arith.constant 0 : index
    %c0_265 = arith.constant 0 : index
    %258 = vector.load %arg2[%c17_263, %c0_264, %c0_265] : memref<18x64x64xf32, #tpu.memory_space<vmem>>, vector<1x64x64xf32>
    %259 = vector.shape_cast %258 : vector<1x64x64xf32> to vector<64x64xf32>
    %cst_266 = arith.constant dense<0.000000e+00> : vector<16x64xf32>
    %260 = tpu.matmul %257, %259, %cst_266 {dimension_numbers = #tpu.dot_dimension_numbers<[1], [0], [0], [1], [0, 0, 1, 1], [], []>} : vector<16x64xf32>, vector<64x64xf32>, vector<16x64xf32> -> vector<16x64xf32>
    %261 = arith.addf %255, %260 : vector<16x64xf32>
    %262 = vector.broadcast %5 : vector<1x64xf32> to vector<16x64xf32>
    %263 = arith.addf %261, %262 : vector<16x64xf32>
    %cst_267 = arith.constant 0.000000e+00 : f32
    %264 = vector.broadcast %cst_267 : f32 to vector<16x64xf32>
    %265 = arith.maximumf %263, %264 : vector<16x64xf32>
    %c0_268 = arith.constant 0 : index
    %c0_269 = arith.constant 0 : index
    %266 = vector.load %arg3[%c0_268, %c0_269] : memref<64x128xf32, #tpu.memory_space<vmem>>, vector<64x128xf32>
    %cst_270 = arith.constant dense<0.000000e+00> : vector<16x128xf32>
    %267 = tpu.matmul %265, %266, %cst_270 {dimension_numbers = #tpu.dot_dimension_numbers<[1], [0], [0], [1], [0, 0, 1, 1], [], []>} : vector<16x64xf32>, vector<64x128xf32>, vector<16x128xf32> -> vector<16x128xf32>
    %268 = vector.broadcast %6 : vector<1x128xf32> to vector<16x128xf32>
    %269 = arith.addf %267, %268 : vector<16x128xf32>
    %c1_271 = arith.constant 1 : index
    %c0_272 = arith.constant 0 : index
    %c0_273 = arith.constant 0 : index
    %270 = vector.load %arg6[%c1_271, %c0_272, %c0_273] : memref<2x16x128xf32, #tpu.memory_space<vmem>>, vector<1x16x128xf32>
    %271 = vector.shape_cast %270 : vector<1x16x128xf32> to vector<16x128xf32>
    %272 = vector.shape_cast %269 : vector<16x128xf32> to vector<1x16x128xf32>
    tpu.vector_store %arg6[%c1_271, %c0_272, %c0_273], %272 {strides = array<i32>} : memref<2x16x128xf32, #tpu.memory_space<vmem>>, vector<1x16x128xf32>,
    return
  }
  func.func @transform_0(%arg0: i32) -> (i32, i32, i32) {
    %c0_i32 = arith.constant 0 : i32
    %c0_i32_0 = arith.constant 0 : i32
    %c0_i32_1 = arith.constant 0 : i32
    return %arg0, %c0_i32, %c0_i32_0 : i32, i32, i32
  }
  func.func @transform_1(%arg0: i32) -> (i32, i32, i32) {
    %c0_i32 = arith.constant 0 : i32
    %c0_i32_0 = arith.constant 0 : i32
    %c0_i32_1 = arith.constant 0 : i32
    %c0_i32_2 = arith.constant 0 : i32
    return %c0_i32, %c0_i32_0, %c0_i32_1 : i32, i32, i32
  }
  func.func @transform_2(%arg0: i32) -> (i32, i32) {
    %c0_i32 = arith.constant 0 : i32
    %c0_i32_0 = arith.constant 0 : i32
    %c0_i32_1 = arith.constant 0 : i32
    return %c0_i32, %c0_i32_0 : i32, i32
  }
  func.func @transform_3(%arg0: i32) -> (i32, i32) {
    %c0_i32 = arith.constant 0 : i32
    %c0_i32_0 = arith.constant 0 : i32
    %c0_i32_1 = arith.constant 0 : i32
    return %c0_i32, %c0_i32_0 : i32, i32
  }
  func.func @transform_4(%arg0: i32) -> (i32, i32) {
    %c0_i32 = arith.constant 0 : i32
    %c0_i32_0 = arith.constant 0 : i32
    %c0_i32_1 = arith.constant 0 : i32
    return %c0_i32, %c0_i32_0 : i32, i32
  }
  func.func @transform_5(%arg0: i32) -> (i32, i32, i32) {
    %c0_i32 = arith.constant 0 : i32
    %c0_i32_0 = arith.constant 0 : i32
    %c0_i32_1 = arith.constant 0 : i32
    return %arg0, %c0_i32, %c0_i32_0 : i32, i32, i32
  }
}

</mosaic_0001>

<llo_original>
// kernel: block_type_c_forward.1
$region0: #{block_type_c_forward.1}
  #allocation0 [shape = 'u32[]', space=smem, size = 0x4, offset = 0x4, fixed_abs, tag = 'smem constant byte address 0x4 - core index']
  #allocation1 [shape = 'u32[72,128]{1,0:T(1,128)}', space=vmem, size = 0x9000, scoped, tag = 'internal scratch']
  #allocation2 [shape = 'f32[2,26,104]{2,1,0:T(8,128)}', space=vmem, size = 0x8000, scoped, tag = 'scratch operand']
  #allocation3 [shape = 'f32[2,18,72]{2,1,0:T(8,128)}', space=vmem, size = 0x6000, scoped, tag = 'scratch operand']
  %s0 = inlined_call_operand.vmem [shape: f32[2,16,64], index: 0, kind: input, shape index: {}]
  %s1 = inlined_call_operand.hbm [shape: f32[18,64,64], index: 1, kind: input, shape index: {}]
  %s2 = inlined_call_operand.vmem [shape: f32[64,128], index: 2, kind: input, shape index: {}]
  %s3 = inlined_call_operand.vmem [shape: f32[2,64], index: 3, kind: input, shape index: {}]
  %s4 = inlined_call_operand.vmem [shape: f32[1,128], index: 4, kind: input, shape index: {}]
  %s5 = inlined_call_operand.vmem [shape: f32[2,16,128], index: 5, kind: output, shape index: {}]
  %s6 = sld [smem:[#allocation0]]
  $region38: #{block_type_c_forward.1} parent=0
    _
  %s8 = ssub.s32 1, %s6
  %s9 = scalar_select 0, %s8, %s6
  $region1: #{block_type_c_forward.1} parent=0
    #allocation4 [shape = 'u8[589824]{0}', space=vmem, size = 0x90000, scoped, tag = 'input window, operand 1, single buffered']
    #allocation5 [shape = 's32[1]{0}', space=sflag, size = 0x4, scoped, tag = 'scoped memory for block_type_c_forward.1']
    %10 = vsyncpa [#allocation5], 0
    // Predicated region
    $region2: #{block_type_c_forward.1} parent=1 // pred_check
      _
    $region3: #{block_type_c_forward.1} parent=1 // pred_check_branch
      %12 = sbr.rel (0) target = $region5
    $region4: #{block_type_c_forward.1} parent=1 // pred_region
      _
    $region5: #{block_type_c_forward.1} parent=1 // pred_fallthru
      _
    // Predicated region
    $region6: #{block_type_c_forward.1} parent=1 // pred_check
      _
    $region7: #{block_type_c_forward.1} parent=1 // pred_check_branch
      %14 = sbr.rel (0) target = $region9
    $region8: #{block_type_c_forward.1} parent=1 // pred_region
      %16 = vsyncadd [#allocation5], 0
      %s17 = sshll.u32 %s1, 4
      %s18 = int_to_ptr.hbm [resolvable:$true] %s17
      %s19 = sshll.u32 [#allocation4], 4
      %s20 = int_to_ptr.vmem [resolvable:$true] %s19
      %25 = dma.hbm_to_vmem [thread:$0]  %s18, 18432, %s20, [#allocation5], 128, 128, 8
    $region9: #{block_type_c_forward.1} parent=1 // pred_fallthru
      _
    // Predicated region
    $region10: #{block_type_c_forward.1} parent=1 // pred_check
      _
    $region11: #{block_type_c_forward.1} parent=1 // pred_check_branch
      %27 = sbr.rel (0) target = $region13
    $region12: #{block_type_c_forward.1} parent=1 // pred_region
      _
    $region13: #{block_type_c_forward.1} parent=1 // pred_fallthru
      _
    // Predicated region
    $region14: #{block_type_c_forward.1} parent=1 // pred_check
      _
    $region15: #{block_type_c_forward.1} parent=1 // pred_check_branch
      %29 = sbr.rel (0) target = $region17
    $region16: #{block_type_c_forward.1} parent=1 // pred_region
      _
    $region17: #{block_type_c_forward.1} parent=1 // pred_fallthru
      _
    // Predicated region
    $region18: #{block_type_c_forward.1} parent=1 // pred_check
      _
    $region19: #{block_type_c_forward.1} parent=1 // pred_check_branch
      %31 = sbr.rel (0) target = $region21
    $region20: #{block_type_c_forward.1} parent=1 // pred_region
      _
    $region21: #{block_type_c_forward.1} parent=1 // pred_fallthru
      _
    // Predicated region
    $region22: #{block_type_c_forward.1} parent=1 // pred_check
      _
    $region23: #{block_type_c_forward.1} parent=1 // pred_check_branch
      %33 = sbr.rel (0) target = $region25
    $region24: #{block_type_c_forward.1} parent=1 // pred_region
      %35 = dma.done [#allocation5], 18432
    $region25: #{block_type_c_forward.1} parent=1 // pred_fallthru
      _
    %p36 = scmp.eq.s32.totalorder 0, 0
    // Predicated region
    $region26: #{block_type_c_forward.1} parent=1 // pred_check
      %p37 = pneg %p36
    $region27: #{block_type_c_forward.1} parent=1 // pred_check_branch
      %39 = sbr.rel (%p37) target = $region29
    $region28: #{block_type_c_forward.1} parent=1 // pred_region
      %vm40 = vcmask 850944
      %41 = vst.msk [vmem:[#allocation2] sm:$0xff] %vm40, 0.0
      %42 = vst.msk [vmem:[#allocation2 + $0x8] sm:$0xff] %vm40, 0.0
      %43 = vst.msk [vmem:[#allocation2 + $0x10] sm:$0xff] %vm40, 0.0
      %vm44 = vcmask 844800
      %45 = vst.msk [vmem:[#allocation2 + $0x18] sm:$0x3] %vm44, 0.0
      %46 = vst.msk [vmem:[#allocation2 + $0x20] sm:$0xff] %vm40, 0.0
      %47 = vst.msk [vmem:[#allocation2 + $0x28] sm:$0xff] %vm40, 0.0
      %48 = vst.msk [vmem:[#allocation2 + $0x30] sm:$0xff] %vm40, 0.0
      %49 = vst.msk [vmem:[#allocation2 + $0x38] sm:$0x3] %vm44, 0.0
      %vm50 = vcmask 588800
      %51 = vst.msk [vmem:[#allocation3] sm:$0xff] %vm50, 0.0
      %52 = vst.msk [vmem:[#allocation3 + $0x8] sm:$0xff] %vm50, 0.0
      %vm53 = vcmask 582656
      %54 = vst.msk [vmem:[#allocation3 + $0x10] sm:$0x3] %vm53, 0.0
      %55 = vst.msk [vmem:[#allocation3 + $0x18] sm:$0xff] %vm50, 0.0
      %56 = vst.msk [vmem:[#allocation3 + $0x20] sm:$0xff] %vm50, 0.0
      %57 = vst.msk [vmem:[#allocation3 + $0x28] sm:$0x3] %vm53, 0.0
    $region29: #{block_type_c_forward.1} parent=1 // pred_fallthru
      _
    %v58 = vld [vmem:[%s3] sm:$0x3]
    %v59 = vld [vmem:[%s4] sm:$0x1]
    %v60 = vld [vmem:[%s0] sm:$0xff]
    %v61 = vld [vmem:[%s0 + $0x8] sm:$0xff]
    %64 = vrot.lane.b32.xlu0 %v60, 20
    %v65 = vpop.permute.xlu0 %64
    %66 = vrot.lane.b32.xlu0 %v61, 20
    %v67 = vpop.permute.xlu0 %66
    %vm70 = vcmask 687264
    %71 = vst.msk [vmem:[#allocation2 + $0x5] sm:$0xff] %vm70, %v65
    %72 = vst.msk [vmem:[#allocation2 + $0xd] sm:$0xff] %vm70, %v67
    %v73 = vld [vmem:[#allocation2] sm:$0xff]
    %v74 = vld [vmem:[#allocation2 + $0x8] sm:$0xff]
    %v75 = vld [vmem:[#allocation4] sm:$0xff]
    %v76 = vld [vmem:[#allocation4 + $0x8] sm:$0xff]
    %v77 = vld [vmem:[#allocation4 + $0x10] sm:$0xff]
    %v78 = vld [vmem:[#allocation4 + $0x18] sm:$0xff]
    %v79 = vld [vmem:[#allocation4 + $0x20] sm:$0xff]
    %v80 = vld [vmem:[#allocation4 + $0x28] sm:$0xff]
    %v81 = vld [vmem:[#allocation4 + $0x30] sm:$0xff]
    %v82 = vld [vmem:[#allocation4 + $0x38] sm:$0xff]
    %s83 = scalar_lea.vmem [#allocation4], 64
    %v84 = vld [vmem:[%s83] sm:$0xff]
    %v85 = vld [vmem:[%s83 + $0x8] sm:$0xff]
    %v86 = vld [vmem:[%s83 + $0x10] sm:$0xff]
    %v87 = vld [vmem:[%s83 + $0x18] sm:$0xff]
    %v88 = vld [vmem:[%s83 + $0x20] sm:$0xff]
    %v89 = vld [vmem:[%s83 + $0x28] sm:$0xff]
    %v90 = vld [vmem:[%s83 + $0x30] sm:$0xff]
    %v91 = vld [vmem:[%s83 + $0x38] sm:$0xff]
    %94 = vrot.lane.b32.xlu0 %v73, 108
    %v95 = vpop.permute.xlu0 %94
    %96 = vrot.lane.b32.xlu0 %v74, 108
    %v97 = vpop.permute.xlu0 %96
    %vm98 = vcmask 523264
    %v99 = vsel %vm98, %v95, 0
    %v101 = vsel %vm98, %v97, 0
    %103 = vmatpush.msra.mxu0 0.0
    %104 = vmatpush.msra.mxu0 0.0
    %105 = vmatpush.msra.mxu0 0.0
    %106 = vmatpush.msra.mxu0 0.0
    %107 = vmatpush.msra.mxu0 0.0
    %108 = vmatpush.msra.mxu0 0.0
    %109 = vmatpush.msra.mxu0 0.0
    %110 = vmatpush.msra.mxu0 0.0
    %111 = vmatpush.msra.mxu0 %v91
    %112 = vmatpush.msra.mxu0 %v90
    %113 = vmatpush.msra.mxu0 %v89
    %114 = vmatpush.msra.mxu0 %v88
    %115 = vmatpush.msra.mxu0 %v87
    %116 = vmatpush.msra.mxu0 %v86
    %117 = vmatpush.msra.mxu0 %v85
    %118 = vmatpush.msra.mxu0 %v84
    %119 = vmatmul.f32.gmra.mxu0 %v99
    %v120 = vpop.f32.mrf.mxu0
    %v121 = vadd.f32 0.0, %v120
    %122 = vmatmul.f32.gmra.mxu0 %v101
    %v123 = vpop.f32.mrf.mxu0
    %v124 = vadd.f32 0.0, %v123
    %125 = vdwg.mxu0
    %v126 = vsel %vm98, %v73, 0
    %v128 = vsel %vm98, %v74, 0
    %130 = vmatpush.msra.mxu0 0.0
    %131 = vmatpush.msra.mxu0 0.0
    %132 = vmatpush.msra.mxu0 0.0
    %133 = vmatpush.msra.mxu0 0.0
    %134 = vmatpush.msra.mxu0 0.0
    %135 = vmatpush.msra.mxu0 0.0
    %136 = vmatpush.msra.mxu0 0.0
    %137 = vmatpush.msra.mxu0 0.0
    %138 = vmatpush.msra.mxu0 %v82
    %139 = vmatpush.msra.mxu0 %v81
    %140 = vmatpush.msra.mxu0 %v80
    %141 = vmatpush.msra.mxu0 %v79
    %142 = vmatpush.msra.mxu0 %v78
    %143 = vmatpush.msra.mxu0 %v77
    %144 = vmatpush.msra.mxu0 %v76
    %145 = vmatpush.msra.mxu0 %v75
    %146 = vmatmul.f32.gmra.mxu0 %v126
    %v147 = vpop.f32.mrf.mxu0
    %v148 = vadd.f32 %v121, %v147
    %149 = vmatmul.f32.gmra.mxu0 %v128
    %v150 = vpop.f32.mrf.mxu0
    %v151 = vadd.f32 %v124, %v150
    %152 = vdwg.mxu0
    %s153 = scalar_lea.vmem [#allocation4], 128
    %v154 = vld [vmem:[%s153] sm:$0xff]
    %v155 = vld [vmem:[%s153 + $0x8] sm:$0xff]
    %v156 = vld [vmem:[%s153 + $0x10] sm:$0xff]
    %v157 = vld [vmem:[%s153 + $0x18] sm:$0xff]
    %v158 = vld [vmem:[%s153 + $0x20] sm:$0xff]
    %v159 = vld [vmem:[%s153 + $0x28] sm:$0xff]
    %v160 = vld [vmem:[%s153 + $0x30] sm:$0xff]
    %v161 = vld [vmem:[%s153 + $0x38] sm:$0xff]
    %162 = vrot.lane.b32.xlu0 %v73, 88
    %v163 = vpop.permute.xlu0 %162
    %164 = vrot.lane.b32.xlu0 %v74, 88
    %v165 = vpop.permute.xlu0 %164
    %v166 = vsel %vm98, %v163, 0
    %v168 = vsel %vm98, %v165, 0
    %170 = vmatpush.msra.mxu0 0.0
    %171 = vmatpush.msra.mxu0 0.0
    %172 = vmatpush.msra.mxu0 0.0
    %173 = vmatpush.msra.mxu0 0.0
    %174 = vmatpush.msra.mxu0 0.0
    %175 = vmatpush.msra.mxu0 0.0
    %176 = vmatpush.msra.mxu0 0.0
    %177 = vmatpush.msra.mxu0 0.0
    %178 = vmatpush.msra.mxu0 %v161
    %179 = vmatpush.msra.mxu0 %v160
    %180 = vmatpush.msra.mxu0 %v159
    %181 = vmatpush.msra.mxu0 %v158
    %182 = vmatpush.msra.mxu0 %v157
    %183 = vmatpush.msra.mxu0 %v156
    %184 = vmatpush.msra.mxu0 %v155
    %185 = vmatpush.msra.mxu0 %v154
    %186 = vmatmul.f32.gmra.mxu0 %v166
    %v187 = vpop.f32.mrf.mxu0
    %v188 = vadd.f32 0.0, %v187
    %189 = vmatmul.f32.gmra.mxu0 %v168
    %v190 = vpop.f32.mrf.mxu0
    %v191 = vadd.f32 0.0, %v190
    %192 = vdwg.mxu0
    %v193 = vadd.f32 %v148, %v188
    %v194 = vadd.f32 %v151, %v191
    %v195 = vld [vmem:[#allocation2 + $0x5] sm:$0xff]
    %v196 = vld [vmem:[#allocation2 + $0xd] sm:$0xff]
    %s197 = scalar_lea.vmem [#allocation4], 192
    %v198 = vld [vmem:[%s197] sm:$0xff]
    %v199 = vld [vmem:[%s197 + $0x8] sm:$0xff]
    %v200 = vld [vmem:[%s197 + $0x10] sm:$0xff]
    %v201 = vld [vmem:[%s197 + $0x18] sm:$0xff]
    %v202 = vld [vmem:[%s197 + $0x20] sm:$0xff]
    %v203 = vld [vmem:[%s197 + $0x28] sm:$0xff]
    %v204 = vld [vmem:[%s197 + $0x30] sm:$0xff]
    %v205 = vld [vmem:[%s197 + $0x38] sm:$0xff]
    %v207 = vsel %vm98, %v195, 0
    %v210 = vsel %vm98, %v196, 0
    %212 = vmatpush.msra.mxu0 0.0
    %213 = vmatpush.msra.mxu0 0.0
    %214 = vmatpush.msra.mxu0 0.0
    %215 = vmatpush.msra.mxu0 0.0
    %216 = vmatpush.msra.mxu0 0.0
    %217 = vmatpush.msra.mxu0 0.0
    %218 = vmatpush.msra.mxu0 0.0
    %219 = vmatpush.msra.mxu0 0.0
    %220 = vmatpush.msra.mxu0 %v205
    %221 = vmatpush.msra.mxu0 %v204
    %222 = vmatpush.msra.mxu0 %v203
    %223 = vmatpush.msra.mxu0 %v202
    %224 = vmatpush.msra.mxu0 %v201
    %225 = vmatpush.msra.mxu0 %v200
    %226 = vmatpush.msra.mxu0 %v199
    %227 = vmatpush.msra.mxu0 %v198
    %228 = vmatmul.f32.gmra.mxu0 %v207
    %v229 = vpop.f32.mrf.mxu0
    %v230 = vadd.f32 0.0, %v229
    %231 = vmatmul.f32.gmra.mxu0 %v210
    %v232 = vpop.f32.mrf.mxu0
    %v233 = vadd.f32 0.0, %v232
    %234 = vdwg.mxu0
    %v235 = vadd.f32 %v193, %v230
    %v236 = vadd.f32 %v194, %v233
    %s237 = scalar_lea.vmem [#allocation4], 256
    %v238 = vld [vmem:[%s237] sm:$0xff]
    %v239 = vld [vmem:[%s237 + $0x8] sm:$0xff]
    %v240 = vld [vmem:[%s237 + $0x10] sm:$0xff]
    %v241 = vld [vmem:[%s237 + $0x18] sm:$0xff]
    %v242 = vld [vmem:[%s237 + $0x20] sm:$0xff]
    %v243 = vld [vmem:[%s237 + $0x28] sm:$0xff]
    %v244 = vld [vmem:[%s237 + $0x30] sm:$0xff]
    %v245 = vld [vmem:[%s237 + $0x38] sm:$0xff]
    %246 = vrot.lane.b32.xlu0 %v195, 108
    %v247 = vpop.permute.xlu0 %246
    %248 = vrot.lane.b32.xlu0 %v196, 108
    %v249 = vpop.permute.xlu0 %248
    %v250 = vsel %vm98, %v247, 0
    %v252 = vsel %vm98, %v249, 0
    %254 = vmatpush.msra.mxu0 0.0
    %255 = vmatpush.msra.mxu0 0.0
    %256 = vmatpush.msra.mxu0 0.0
    %257 = vmatpush.msra.mxu0 0.0
    %258 = vmatpush.msra.mxu0 0.0
    %259 = vmatpush.msra.mxu0 0.0
    %260 = vmatpush.msra.mxu0 0.0
    %261 = vmatpush.msra.mxu0 0.0
    %262 = vmatpush.msra.mxu0 %v245
    %263 = vmatpush.msra.mxu0 %v244
    %264 = vmatpush.msra.mxu0 %v243
    %265 = vmatpush.msra.mxu0 %v242
    %266 = vmatpush.msra.mxu0 %v241
    %267 = vmatpush.msra.mxu0 %v240
    %268 = vmatpush.msra.mxu0 %v239
    %269 = vmatpush.msra.mxu0 %v238
    %270 = vmatmul.f32.gmra.mxu0 %v250
    %v271 = vpop.f32.mrf.mxu0
    %v272 = vadd.f32 0.0, %v271
    %273 = vmatmul.f32.gmra.mxu0 %v252
    %v274 = vpop.f32.mrf.mxu0
    %v275 = vadd.f32 0.0, %v274
    %276 = vdwg.mxu0
    %v277 = vadd.f32 %v235, %v272
    %v278 = vadd.f32 %v236, %v275
    %s279 = scalar_lea.vmem [#allocation4], 320
    %v280 = vld [vmem:[%s279] sm:$0xff]
    %v281 = vld [vmem:[%s279 + $0x8] sm:$0xff]
    %v282 = vld [vmem:[%s279 + $0x10] sm:$0xff]
    %v283 = vld [vmem:[%s279 + $0x18] sm:$0xff]
    %v284 = vld [vmem:[%s279 + $0x20] sm:$0xff]
    %v285 = vld [vmem:[%s279 + $0x28] sm:$0xff]
    %v286 = vld [vmem:[%s279 + $0x30] sm:$0xff]
    %v287 = vld [vmem:[%s279 + $0x38] sm:$0xff]
    %288 = vrot.lane.b32.xlu0 %v195, 88
    %v289 = vpop.permute.xlu0 %288
    %290 = vrot.lane.b32.xlu0 %v196, 88
    %v291 = vpop.permute.xlu0 %290
    %v292 = vsel %vm98, %v289, 0
    %v294 = vsel %vm98, %v291, 0
    %296 = vmatpush.msra.mxu0 0.0
    %297 = vmatpush.msra.mxu0 0.0
    %298 = vmatpush.msra.mxu0 0.0
    %299 = vmatpush.msra.mxu0 0.0
    %300 = vmatpush.msra.mxu0 0.0
    %301 = vmatpush.msra.mxu0 0.0
    %302 = vmatpush.msra.mxu0 0.0
    %303 = vmatpush.msra.mxu0 0.0
    %304 = vmatpush.msra.mxu0 %v287
    %305 = vmatpush.msra.mxu0 %v286
    %306 = vmatpush.msra.mxu0 %v285
    %307 = vmatpush.msra.mxu0 %v284
    %308 = vmatpush.msra.mxu0 %v283
    %309 = vmatpush.msra.mxu0 %v282
    %310 = vmatpush.msra.mxu0 %v281
    %311 = vmatpush.msra.mxu0 %v280
    %312 = vmatmul.f32.gmra.mxu0 %v292
    %v313 = vpop.f32.mrf.mxu0
    %v314 = vadd.f32 0.0, %v313
    %315 = vmatmul.f32.gmra.mxu0 %v294
    %v316 = vpop.f32.mrf.mxu0
    %v317 = vadd.f32 0.0, %v316
    %318 = vdwg.mxu0
    %v319 = vadd.f32 %v277, %v314
    %v320 = vadd.f32 %v278, %v317
    %v321 = vld [vmem:[#allocation2 + $0xa] sm:$0xff]
    %v322 = vld [vmem:[#allocation2 + $0x12] sm:$0xff]
    %s323 = scalar_lea.vmem [#allocation4], 384
    %v324 = vld [vmem:[%s323] sm:$0xff]
    %v325 = vld [vmem:[%s323 + $0x8] sm:$0xff]
    %v326 = vld [vmem:[%s323 + $0x10] sm:$0xff]
    %v327 = vld [vmem:[%s323 + $0x18] sm:$0xff]
    %v328 = vld [vmem:[%s323 + $0x20] sm:$0xff]
    %v329 = vld [vmem:[%s323 + $0x28] sm:$0xff]
    %v330 = vld [vmem:[%s323 + $0x30] sm:$0xff]
    %v331 = vld [vmem:[%s323 + $0x38] sm:$0xff]
    %v333 = vsel %vm98, %v321, 0
    %v336 = vsel %vm98, %v322, 0
    %338 = vmatpush.msra.mxu0 0.0
    %339 = vmatpush.msra.mxu0 0.0
    %340 = vmatpush.msra.mxu0 0.0
    %341 = vmatpush.msra.mxu0 0.0
    %342 = vmatpush.msra.mxu0 0.0
    %343 = vmatpush.msra.mxu0 0.0
    %344 = vmatpush.msra.mxu0 0.0
    %345 = vmatpush.msra.mxu0 0.0
    %346 = vmatpush.msra.mxu0 %v331
    %347 = vmatpush.msra.mxu0 %v330
    %348 = vmatpush.msra.mxu0 %v329
    %349 = vmatpush.msra.mxu0 %v328
    %350 = vmatpush.msra.mxu0 %v327
    %351 = vmatpush.msra.mxu0 %v326
    %352 = vmatpush.msra.mxu0 %v325
    %353 = vmatpush.msra.mxu0 %v324
    %354 = vmatmul.f32.gmra.mxu0 %v333
    %v355 = vpop.f32.mrf.mxu0
    %v356 = vadd.f32 0.0, %v355
    %357 = vmatmul.f32.gmra.mxu0 %v336
    %v358 = vpop.f32.mrf.mxu0
    %v359 = vadd.f32 0.0, %v358
    %360 = vdwg.mxu0
    %v361 = vadd.f32 %v319, %v356
    %v362 = vadd.f32 %v320, %v359
    %s363 = scalar_lea.vmem [#allocation4], 448
    %v364 = vld [vmem:[%s363] sm:$0xff]
    %v365 = vld [vmem:[%s363 + $0x8] sm:$0xff]
    %v366 = vld [vmem:[%s363 + $0x10] sm:$0xff]
    %v367 = vld [vmem:[%s363 + $0x18] sm:$0xff]
    %v368 = vld [vmem:[%s363 + $0x20] sm:$0xff]
    %v369 = vld [vmem:[%s363 + $0x28] sm:$0xff]
    %v370 = vld [vmem:[%s363 + $0x30] sm:$0xff]
    %v371 = vld [vmem:[%s363 + $0x38] sm:$0xff]
    %372 = vrot.lane.b32.xlu0 %v321, 108
    %v373 = vpop.permute.xlu0 %372
    %374 = vrot.lane.b32.xlu0 %v322, 108
    %v375 = vpop.permute.xlu0 %374
    %v376 = vsel %vm98, %v373, 0
    %v378 = vsel %vm98, %v375, 0
    %380 = vmatpush.msra.mxu0 0.0
    %381 = vmatpush.msra.mxu0 0.0
    %382 = vmatpush.msra.mxu0 0.0
    %383 = vmatpush.msra.mxu0 0.0
    %384 = vmatpush.msra.mxu0 0.0
    %385 = vmatpush.msra.mxu0 0.0
    %386 = vmatpush.msra.mxu0 0.0
    %387 = vmatpush.msra.mxu0 0.0
    %388 = vmatpush.msra.mxu0 %v371
    %389 = vmatpush.msra.mxu0 %v370
    %390 = vmatpush.msra.mxu0 %v369
    %391 = vmatpush.msra.mxu0 %v368
    %392 = vmatpush.msra.mxu0 %v367
    %393 = vmatpush.msra.mxu0 %v366
    %394 = vmatpush.msra.mxu0 %v365
    %395 = vmatpush.msra.mxu0 %v364
    %396 = vmatmul.f32.gmra.mxu0 %v376
    %v397 = vpop.f32.mrf.mxu0
    %v398 = vadd.f32 0.0, %v397
    %399 = vmatmul.f32.gmra.mxu0 %v378
    %v400 = vpop.f32.mrf.mxu0
    %v401 = vadd.f32 0.0, %v400
    %402 = vdwg.mxu0
    %v403 = vadd.f32 %v361, %v398
    %v404 = vadd.f32 %v362, %v401
    %s405 = scalar_lea.vmem [#allocation4], 512
    %v406 = vld [vmem:[%s405] sm:$0xff]
    %v407 = vld [vmem:[%s405 + $0x8] sm:$0xff]
    %v408 = vld [vmem:[%s405 + $0x10] sm:$0xff]
    %v409 = vld [vmem:[%s405 + $0x18] sm:$0xff]
    %v410 = vld [vmem:[%s405 + $0x20] sm:$0xff]
    %v411 = vld [vmem:[%s405 + $0x28] sm:$0xff]
    %v412 = vld [vmem:[%s405 + $0x30] sm:$0xff]
    %v413 = vld [vmem:[%s405 + $0x38] sm:$0xff]
    %414 = vrot.lane.b32.xlu0 %v321, 88
    %v415 = vpop.permute.xlu0 %414
    %416 = vrot.lane.b32.xlu0 %v322, 88
    %v417 = vpop.permute.xlu0 %416
    %v418 = vsel %vm98, %v415, 0
    %v420 = vsel %vm98, %v417, 0
    %422 = vmatpush.msra.mxu0 0.0
    %423 = vmatpush.msra.mxu0 0.0
    %424 = vmatpush.msra.mxu0 0.0
    %425 = vmatpush.msra.mxu0 0.0
    %426 = vmatpush.msra.mxu0 0.0
    %427 = vmatpush.msra.mxu0 0.0
    %428 = vmatpush.msra.mxu0 0.0
    %429 = vmatpush.msra.mxu0 0.0
    %430 = vmatpush.msra.mxu0 %v413
    %431 = vmatpush.msra.mxu0 %v412
    %432 = vmatpush.msra.mxu0 %v411
    %433 = vmatpush.msra.mxu0 %v410
    %434 = vmatpush.msra.mxu0 %v409
    %435 = vmatpush.msra.mxu0 %v408
    %436 = vmatpush.msra.mxu0 %v407
    %437 = vmatpush.msra.mxu0 %v406
    %438 = vmatmul.f32.gmra.mxu0 %v418
    %v439 = vpop.f32.mrf.mxu0
    %v440 = vadd.f32 0.0, %v439
    %441 = vmatmul.f32.gmra.mxu0 %v420
    %v442 = vpop.f32.mrf.mxu0
    %v443 = vadd.f32 0.0, %v442
    %444 = vdwg.mxu0
    %v445 = vadd.f32 %v403, %v440
    %v446 = vadd.f32 %v404, %v443
    %v447 = vperm.slane %v58, 0
    %v448 = vadd.f32 %v445, %v447
    %v449 = vadd.f32 %v446, %v447
    %v450 = vmax.f32 %v448, 0.0
    %v451 = vmax.f32 %v449, 0.0
    %454 = vrot.lane.b32.xlu0 %v450, 4
    %v455 = vpop.permute.xlu0 %454
    %456 = vrot.lane.b32.xlu0 %v451, 4
    %v457 = vpop.permute.xlu0 %456
    %vm460 = vcmask 556064
    %461 = vst.msk [vmem:[#allocation3 + $0x1] sm:$0xff] %vm460, %v455
    %462 = vst.msk [vmem:[#allocation3 + $0x9] sm:$0xff] %vm460, %v457
    %v463 = vld [vmem:[#allocation3] sm:$0xff]
    %v464 = vld [vmem:[#allocation3 + $0x8] sm:$0xff]
    %s465 = scalar_lea.vmem [#allocation4], 576
    %v466 = vld [vmem:[%s465] sm:$0xff]
    %v467 = vld [vmem:[%s465 + $0x8] sm:$0xff]
    %v468 = vld [vmem:[%s465 + $0x10] sm:$0xff]
    %v469 = vld [vmem:[%s465 + $0x18] sm:$0xff]
    %v470 = vld [vmem:[%s465 + $0x20] sm:$0xff]
    %v471 = vld [vmem:[%s465 + $0x28] sm:$0xff]
    %v472 = vld [vmem:[%s465 + $0x30] sm:$0xff]
    %v473 = vld [vmem:[%s465 + $0x38] sm:$0xff]
    %s474 = scalar_lea.vmem [#allocation4], 640
    %v475 = vld [vmem:[%s474] sm:$0xff]
    %v476 = vld [vmem:[%s474 + $0x8] sm:$0xff]
    %v477 = vld [vmem:[%s474 + $0x10] sm:$0xff]
    %v478 = vld [vmem:[%s474 + $0x18] sm:$0xff]
    %v479 = vld [vmem:[%s474 + $0x20] sm:$0xff]
    %v480 = vld [vmem:[%s474 + $0x28] sm:$0xff]
    %v481 = vld [vmem:[%s474 + $0x30] sm:$0xff]
    %v482 = vld [vmem:[%s474 + $0x38] sm:$0xff]
    %485 = vrot.lane.b32.xlu0 %v463, 124
    %v486 = vpop.permute.xlu0 %485
    %487 = vrot.lane.b32.xlu0 %v464, 124
    %v488 = vpop.permute.xlu0 %487
    %v489 = vsel %vm98, %v486, 0
    %v491 = vsel %vm98, %v488, 0
    %493 = vmatpush.msra.mxu0 0.0
    %494 = vmatpush.msra.mxu0 0.0
    %495 = vmatpush.msra.mxu0 0.0
    %496 = vmatpush.msra.mxu0 0.0
    %497 = vmatpush.msra.mxu0 0.0
    %498 = vmatpush.msra.mxu0 0.0
    %499 = vmatpush.msra.mxu0 0.0
    %500 = vmatpush.msra.mxu0 0.0
    %501 = vmatpush.msra.mxu0 %v482
    %502 = vmatpush.msra.mxu0 %v481
    %503 = vmatpush.msra.mxu0 %v480
    %504 = vmatpush.msra.mxu0 %v479
    %505 = vmatpush.msra.mxu0 %v478
    %506 = vmatpush.msra.mxu0 %v477
    %507 = vmatpush.msra.mxu0 %v476
    %508 = vmatpush.msra.mxu0 %v475
    %509 = vmatmul.f32.gmra.mxu0 %v489
    %v510 = vpop.f32.mrf.mxu0
    %v511 = vadd.f32 0.0, %v510
    %512 = vmatmul.f32.gmra.mxu0 %v491
    %v513 = vpop.f32.mrf.mxu0
    %v514 = vadd.f32 0.0, %v513
    %515 = vdwg.mxu0
    %v516 = vsel %vm98, %v463, 0
    %v518 = vsel %vm98, %v464, 0
    %520 = vmatpush.msra.mxu0 0.0
    %521 = vmatpush.msra.mxu0 0.0
    %522 = vmatpush.msra.mxu0 0.0
    %523 = vmatpush.msra.mxu0 0.0
    %524 = vmatpush.msra.mxu0 0.0
    %525 = vmatpush.msra.mxu0 0.0
    %526 = vmatpush.msra.mxu0 0.0
    %527 = vmatpush.msra.mxu0 0.0
    %528 = vmatpush.msra.mxu0 %v473
    %529 = vmatpush.msra.mxu0 %v472
    %530 = vmatpush.msra.mxu0 %v471
    %531 = vmatpush.msra.mxu0 %v470
    %532 = vmatpush.msra.mxu0 %v469
    %533 = vmatpush.msra.mxu0 %v468
    %534 = vmatpush.msra.mxu0 %v467
    %535 = vmatpush.msra.mxu0 %v466
    %536 = vmatmul.f32.gmra.mxu0 %v516
    %v537 = vpop.f32.mrf.mxu0
    %v538 = vadd.f32 %v511, %v537
    %539 = vmatmul.f32.gmra.mxu0 %v518
    %v540 = vpop.f32.mrf.mxu0
    %v541 = vadd.f32 %v514, %v540
    %542 = vdwg.mxu0
    %s543 = scalar_lea.vmem [#allocation4], 704
    %v544 = vld [vmem:[%s543] sm:$0xff]
    %v545 = vld [vmem:[%s543 + $0x8] sm:$0xff]
    %v546 = vld [vmem:[%s543 + $0x10] sm:$0xff]
    %v547 = vld [vmem:[%s543 + $0x18] sm:$0xff]
    %v548 = vld [vmem:[%s543 + $0x20] sm:$0xff]
    %v549 = vld [vmem:[%s543 + $0x28] sm:$0xff]
    %v550 = vld [vmem:[%s543 + $0x30] sm:$0xff]
    %v551 = vld [vmem:[%s543 + $0x38] sm:$0xff]
    %552 = vrot.lane.b32.xlu0 %v463, 120
    %v553 = vpop.permute.xlu0 %552
    %554 = vrot.lane.b32.xlu0 %v464, 120
    %v555 = vpop.permute.xlu0 %554
    %v556 = vsel %vm98, %v553, 0
    %v558 = vsel %vm98, %v555, 0
    %560 = vmatpush.msra.mxu0 0.0
    %561 = vmatpush.msra.mxu0 0.0
    %562 = vmatpush.msra.mxu0 0.0
    %563 = vmatpush.msra.mxu0 0.0
    %564 = vmatpush.msra.mxu0 0.0
    %565 = vmatpush.msra.mxu0 0.0
    %566 = vmatpush.msra.mxu0 0.0
    %567 = vmatpush.msra.mxu0 0.0
    %568 = vmatpush.msra.mxu0 %v551
    %569 = vmatpush.msra.mxu0 %v550
    %570 = vmatpush.msra.mxu0 %v549
    %571 = vmatpush.msra.mxu0 %v548
    %572 = vmatpush.msra.mxu0 %v547
    %573 = vmatpush.msra.mxu0 %v546
    %574 = vmatpush.msra.mxu0 %v545
    %575 = vmatpush.msra.mxu0 %v544
    %576 = vmatmul.f32.gmra.mxu0 %v556
    %v577 = vpop.f32.mrf.mxu0
    %v578 = vadd.f32 0.0, %v577
    %579 = vmatmul.f32.gmra.mxu0 %v558
    %v580 = vpop.f32.mrf.mxu0
    %v581 = vadd.f32 0.0, %v580
    %582 = vdwg.mxu0
    %v583 = vadd.f32 %v538, %v578
    %v584 = vadd.f32 %v541, %v581
    %v585 = vld [vmem:[#allocation3 + $0x1] sm:$0xff]
    %v586 = vld [vmem:[#allocation3 + $0x9] sm:$0xff]
    %s587 = scalar_lea.vmem [#allocation4], 768
    %v588 = vld [vmem:[%s587] sm:$0xff]
    %v589 = vld [vmem:[%s587 + $0x8] sm:$0xff]
    %v590 = vld [vmem:[%s587 + $0x10] sm:$0xff]
    %v591 = vld [vmem:[%s587 + $0x18] sm:$0xff]
    %v592 = vld [vmem:[%s587 + $0x20] sm:$0xff]
    %v593 = vld [vmem:[%s587 + $0x28] sm:$0xff]
    %v594 = vld [vmem:[%s587 + $0x30] sm:$0xff]
    %v595 = vld [vmem:[%s587 + $0x38] sm:$0xff]
    %v597 = vsel %vm98, %v585, 0
    %v600 = vsel %vm98, %v586, 0
    %602 = vmatpush.msra.mxu0 0.0
    %603 = vmatpush.msra.mxu0 0.0
    %604 = vmatpush.msra.mxu0 0.0
    %605 = vmatpush.msra.mxu0 0.0
    %606 = vmatpush.msra.mxu0 0.0
    %607 = vmatpush.msra.mxu0 0.0
    %608 = vmatpush.msra.mxu0 0.0
    %609 = vmatpush.msra.mxu0 0.0
    %610 = vmatpush.msra.mxu0 %v595
    %611 = vmatpush.msra.mxu0 %v594
    %612 = vmatpush.msra.mxu0 %v593
    %613 = vmatpush.msra.mxu0 %v592
    %614 = vmatpush.msra.mxu0 %v591
    %615 = vmatpush.msra.mxu0 %v590
    %616 = vmatpush.msra.mxu0 %v589
    %617 = vmatpush.msra.mxu0 %v588
    %618 = vmatmul.f32.gmra.mxu0 %v597
    %v619 = vpop.f32.mrf.mxu0
    %v620 = vadd.f32 0.0, %v619
    %621 = vmatmul.f32.gmra.mxu0 %v600
    %v622 = vpop.f32.mrf.mxu0
    %v623 = vadd.f32 0.0, %v622
    %624 = vdwg.mxu0
    %v625 = vadd.f32 %v583, %v620
    %v626 = vadd.f32 %v584, %v623
    %s627 = scalar_lea.vmem [#allocation4], 832
    %v628 = vld [vmem:[%s627] sm:$0xff]
    %v629 = vld [vmem:[%s627 + $0x8] sm:$0xff]
    %v630 = vld [vmem:[%s627 + $0x10] sm:$0xff]
    %v631 = vld [vmem:[%s627 + $0x18] sm:$0xff]
    %v632 = vld [vmem:[%s627 + $0x20] sm:$0xff]
    %v633 = vld [vmem:[%s627 + $0x28] sm:$0xff]
    %v634 = vld [vmem:[%s627 + $0x30] sm:$0xff]
    %v635 = vld [vmem:[%s627 + $0x38] sm:$0xff]
    %636 = vrot.lane.b32.xlu0 %v585, 124
    %v637 = vpop.permute.xlu0 %636
    %638 = vrot.lane.b32.xlu0 %v586, 124
    %v639 = vpop.permute.xlu0 %638
    %v640 = vsel %vm98, %v637, 0
    %v642 = vsel %vm98, %v639, 0
    %644 = vmatpush.msra.mxu0 0.0
    %645 = vmatpush.msra.mxu0 0.0
    %646 = vmatpush.msra.mxu0 0.0
    %647 = vmatpush.msra.mxu0 0.0
    %648 = vmatpush.msra.mxu0 0.0
    %649 = vmatpush.msra.mxu0 0.0
    %650 = vmatpush.msra.mxu0 0.0
    %651 = vmatpush.msra.mxu0 0.0
    %652 = vmatpush.msra.mxu0 %v635
    %653 = vmatpush.msra.mxu0 %v634
    %654 = vmatpush.msra.mxu0 %v633
    %655 = vmatpush.msra.mxu0 %v632
    %656 = vmatpush.msra.mxu0 %v631
    %657 = vmatpush.msra.mxu0 %v630
    %658 = vmatpush.msra.mxu0 %v629
    %659 = vmatpush.msra.mxu0 %v628
    %660 = vmatmul.f32.gmra.mxu0 %v640
    %v661 = vpop.f32.mrf.mxu0
    %v662 = vadd.f32 0.0, %v661
    %663 = vmatmul.f32.gmra.mxu0 %v642
    %v664 = vpop.f32.mrf.mxu0
    %v665 = vadd.f32 0.0, %v664
    %666 = vdwg.mxu0
    %v667 = vadd.f32 %v625, %v662
    %v668 = vadd.f32 %v626, %v665
    %s669 = scalar_lea.vmem [#allocation4], 896
    %v670 = vld [vmem:[%s669] sm:$0xff]
    %v671 = vld [vmem:[%s669 + $0x8] sm:$0xff]
    %v672 = vld [vmem:[%s669 + $0x10] sm:$0xff]
    %v673 = vld [vmem:[%s669 + $0x18] sm:$0xff]
    %v674 = vld [vmem:[%s669 + $0x20] sm:$0xff]
    %v675 = vld [vmem:[%s669 + $0x28] sm:$0xff]
    %v676 = vld [vmem:[%s669 + $0x30] sm:$0xff]
    %v677 = vld [vmem:[%s669 + $0x38] sm:$0xff]
    %678 = vrot.lane.b32.xlu0 %v585, 120
    %v679 = vpop.permute.xlu0 %678
    %680 = vrot.lane.b32.xlu0 %v586, 120
    %v681 = vpop.permute.xlu0 %680
    %v682 = vsel %vm98, %v679, 0
    %v684 = vsel %vm98, %v681, 0
    %686 = vmatpush.msra.mxu0 0.0
    %687 = vmatpush.msra.mxu0 0.0
    %688 = vmatpush.msra.mxu0 0.0
    %689 = vmatpush.msra.mxu0 0.0
    %690 = vmatpush.msra.mxu0 0.0
    %691 = vmatpush.msra.mxu0 0.0
    %692 = vmatpush.msra.mxu0 0.0
    %693 = vmatpush.msra.mxu0 0.0
    %694 = vmatpush.msra.mxu0 %v677
    %695 = vmatpush.msra.mxu0 %v676
    %696 = vmatpush.msra.mxu0 %v675
    %697 = vmatpush.msra.mxu0 %v674
    %698 = vmatpush.msra.mxu0 %v673
    %699 = vmatpush.msra.mxu0 %v672
    %700 = vmatpush.msra.mxu0 %v671
    %701 = vmatpush.msra.mxu0 %v670
    %702 = vmatmul.f32.gmra.mxu0 %v682
    %v703 = vpop.f32.mrf.mxu0
    %v704 = vadd.f32 0.0, %v703
    %705 = vmatmul.f32.gmra.mxu0 %v684
    %v706 = vpop.f32.mrf.mxu0
    %v707 = vadd.f32 0.0, %v706
    %708 = vdwg.mxu0
    %v709 = vadd.f32 %v667, %v704
    %v710 = vadd.f32 %v668, %v707
    %v711 = vld [vmem:[#allocation3 + $0x2] sm:$0xff]
    %v712 = vld [vmem:[#allocation3 + $0xa] sm:$0xff]
    %s713 = scalar_lea.vmem [#allocation4], 960
    %v714 = vld [vmem:[%s713] sm:$0xff]
    %v715 = vld [vmem:[%s713 + $0x8] sm:$0xff]
    %v716 = vld [vmem:[%s713 + $0x10] sm:$0xff]
    %v717 = vld [vmem:[%s713 + $0x18] sm:$0xff]
    %v718 = vld [vmem:[%s713 + $0x20] sm:$0xff]
    %v719 = vld [vmem:[%s713 + $0x28] sm:$0xff]
    %v720 = vld [vmem:[%s713 + $0x30] sm:$0xff]
    %v721 = vld [vmem:[%s713 + $0x38] sm:$0xff]
    %v723 = vsel %vm98, %v711, 0
    %v726 = vsel %vm98, %v712, 0
    %728 = vmatpush.msra.mxu0 0.0
    %729 = vmatpush.msra.mxu0 0.0
    %730 = vmatpush.msra.mxu0 0.0
    %731 = vmatpush.msra.mxu0 0.0
    %732 = vmatpush.msra.mxu0 0.0
    %733 = vmatpush.msra.mxu0 0.0
    %734 = vmatpush.msra.mxu0 0.0
    %735 = vmatpush.msra.mxu0 0.0
    %736 = vmatpush.msra.mxu0 %v721
    %737 = vmatpush.msra.mxu0 %v720
    %738 = vmatpush.msra.mxu0 %v719
    %739 = vmatpush.msra.mxu0 %v718
    %740 = vmatpush.msra.mxu0 %v717
    %741 = vmatpush.msra.mxu0 %v716
    %742 = vmatpush.msra.mxu0 %v715
    %743 = vmatpush.msra.mxu0 %v714
    %744 = vmatmul.f32.gmra.mxu0 %v723
    %v745 = vpop.f32.mrf.mxu0
    %v746 = vadd.f32 0.0, %v745
    %747 = vmatmul.f32.gmra.mxu0 %v726
    %v748 = vpop.f32.mrf.mxu0
    %v749 = vadd.f32 0.0, %v748
    %750 = vdwg.mxu0
    %v751 = vadd.f32 %v709, %v746
    %v752 = vadd.f32 %v710, %v749
    %s753 = scalar_lea.vmem [#allocation4], 1024
    %v754 = vld [vmem:[%s753] sm:$0xff]
    %v755 = vld [vmem:[%s753 + $0x8] sm:$0xff]
    %v756 = vld [vmem:[%s753 + $0x10] sm:$0xff]
    %v757 = vld [vmem:[%s753 + $0x18] sm:$0xff]
    %v758 = vld [vmem:[%s753 + $0x20] sm:$0xff]
    %v759 = vld [vmem:[%s753 + $0x28] sm:$0xff]
    %v760 = vld [vmem:[%s753 + $0x30] sm:$0xff]
    %v761 = vld [vmem:[%s753 + $0x38] sm:$0xff]
    %762 = vrot.lane.b32.xlu0 %v711, 124
    %v763 = vpop.permute.xlu0 %762
    %764 = vrot.lane.b32.xlu0 %v712, 124
    %v765 = vpop.permute.xlu0 %764
    %v766 = vsel %vm98, %v763, 0
    %v768 = vsel %vm98, %v765, 0
    %770 = vmatpush.msra.mxu0 0.0
    %771 = vmatpush.msra.mxu0 0.0
    %772 = vmatpush.msra.mxu0 0.0
    %773 = vmatpush.msra.mxu0 0.0
    %774 = vmatpush.msra.mxu0 0.0
    %775 = vmatpush.msra.mxu0 0.0
    %776 = vmatpush.msra.mxu0 0.0
    %777 = vmatpush.msra.mxu0 0.0
    %778 = vmatpush.msra.mxu0 %v761
    %779 = vmatpush.msra.mxu0 %v760
    %780 = vmatpush.msra.mxu0 %v759
    %781 = vmatpush.msra.mxu0 %v758
    %782 = vmatpush.msra.mxu0 %v757
    %783 = vmatpush.msra.mxu0 %v756
    %784 = vmatpush.msra.mxu0 %v755
    %785 = vmatpush.msra.mxu0 %v754
    %786 = vmatmul.f32.gmra.mxu0 %v766
    %v787 = vpop.f32.mrf.mxu0
    %v788 = vadd.f32 0.0, %v787
    %789 = vmatmul.f32.gmra.mxu0 %v768
    %v790 = vpop.f32.mrf.mxu0
    %v791 = vadd.f32 0.0, %v790
    %792 = vdwg.mxu0
    %v793 = vadd.f32 %v751, %v788
    %v794 = vadd.f32 %v752, %v791
    %s795 = scalar_lea.vmem [#allocation4], 1088
    %v796 = vld [vmem:[%s795] sm:$0xff]
    %v797 = vld [vmem:[%s795 + $0x8] sm:$0xff]
    %v798 = vld [vmem:[%s795 + $0x10] sm:$0xff]
    %v799 = vld [vmem:[%s795 + $0x18] sm:$0xff]
    %v800 = vld [vmem:[%s795 + $0x20] sm:$0xff]
    %v801 = vld [vmem:[%s795 + $0x28] sm:$0xff]
    %v802 = vld [vmem:[%s795 + $0x30] sm:$0xff]
    %v803 = vld [vmem:[%s795 + $0x38] sm:$0xff]
    %804 = vrot.lane.b32.xlu0 %v711, 120
    %v805 = vpop.permute.xlu0 %804
    %806 = vrot.lane.b32.xlu0 %v712, 120
    %v807 = vpop.permute.xlu0 %806
    %v808 = vsel %vm98, %v805, 0
    %v810 = vsel %vm98, %v807, 0
    %812 = vmatpush.msra.mxu0 0.0
    %813 = vmatpush.msra.mxu0 0.0
    %814 = vmatpush.msra.mxu0 0.0
    %815 = vmatpush.msra.mxu0 0.0
    %816 = vmatpush.msra.mxu0 0.0
    %817 = vmatpush.msra.mxu0 0.0
    %818 = vmatpush.msra.mxu0 0.0
    %819 = vmatpush.msra.mxu0 0.0
    %820 = vmatpush.msra.mxu0 %v803
    %821 = vmatpush.msra.mxu0 %v802
    %822 = vmatpush.msra.mxu0 %v801
    %823 = vmatpush.msra.mxu0 %v800
    %824 = vmatpush.msra.mxu0 %v799
    %825 = vmatpush.msra.mxu0 %v798
    %826 = vmatpush.msra.mxu0 %v797
    %827 = vmatpush.msra.mxu0 %v796
    %828 = vmatmul.f32.gmra.mxu0 %v808
    %v829 = vpop.f32.mrf.mxu0
    %v830 = vadd.f32 0.0, %v829
    %831 = vmatmul.f32.gmra.mxu0 %v810
    %v832 = vpop.f32.mrf.mxu0
    %v833 = vadd.f32 0.0, %v832
    %834 = vdwg.mxu0
    %v835 = vadd.f32 %v793, %v830
    %v836 = vadd.f32 %v794, %v833
    %v837 = vperm.slane %v58, 1
    %v838 = vadd.f32 %v835, %v837
    %v839 = vadd.f32 %v836, %v837
    %v840 = vmax.f32 %v838, 0.0
    %v841 = vmax.f32 %v839, 0.0
    %v842 = vld [vmem:[%s2] sm:$0xff]
    %v843 = vld [vmem:[%s2 + $0x8] sm:$0xff]
    %v844 = vld [vmem:[%s2 + $0x10] sm:$0xff]
    %v845 = vld [vmem:[%s2 + $0x18] sm:$0xff]
    %v846 = vld [vmem:[%s2 + $0x20] sm:$0xff]
    %v847 = vld [vmem:[%s2 + $0x28] sm:$0xff]
    %v848 = vld [vmem:[%s2 + $0x30] sm:$0xff]
    %v849 = vld [vmem:[%s2 + $0x38] sm:$0xff]
    %v851 = vperm.slane %v59, 0
    %v854 = vsel %vm98, %v840, 0
    %v857 = vsel %vm98, %v841, 0
    %859 = vmatpush.msra.mxu0 0.0
    %860 = vmatpush.msra.mxu0 0.0
    %861 = vmatpush.msra.mxu0 0.0
    %862 = vmatpush.msra.mxu0 0.0
    %863 = vmatpush.msra.mxu0 0.0
    %864 = vmatpush.msra.mxu0 0.0
    %865 = vmatpush.msra.mxu0 0.0
    %866 = vmatpush.msra.mxu0 0.0
    %867 = vmatpush.msra.mxu0 %v849
    %868 = vmatpush.msra.mxu0 %v848
    %869 = vmatpush.msra.mxu0 %v847
    %870 = vmatpush.msra.mxu0 %v846
    %871 = vmatpush.msra.mxu0 %v845
    %872 = vmatpush.msra.mxu0 %v844
    %873 = vmatpush.msra.mxu0 %v843
    %874 = vmatpush.msra.mxu0 %v842
    %875 = vmatmul.f32.gmra.mxu0 %v854
    %v876 = vpop.f32.mrf.mxu0
    %v877 = vadd.f32 %v851, %v876
    %878 = vmatmul.f32.gmra.mxu0 %v857
    %v879 = vpop.f32.mrf.mxu0
    %v880 = vadd.f32 %v851, %v879
    %881 = vdwg.mxu0
    %882 = vst [vmem:[%s5] sm:$0xff] %v877
    %883 = vst [vmem:[%s5 + $0x8] sm:$0xff] %v880
    %s884 = scalar_lea.vmem %s0, 16
    %v885 = vld [vmem:[%s884] sm:$0xff]
    %v886 = vld [vmem:[%s884 + $0x8] sm:$0xff]
    %889 = vrot.lane.b32.xlu0 %v885, 20
    %v890 = vpop.permute.xlu0 %889
    %891 = vrot.lane.b32.xlu0 %v886, 20
    %v892 = vpop.permute.xlu0 %891
    %s895 = scalar_lea.vmem [#allocation2], 32
    %896 = vst.msk [vmem:[%s895 + $0x5] sm:$0xff] %vm70, %v890
    %897 = vst.msk [vmem:[%s895 + $0xd] sm:$0xff] %vm70, %v892
    %v898 = vld [vmem:[%s895] sm:$0xff]
    %v899 = vld [vmem:[%s895 + $0x8] sm:$0xff]
    %v900 = vld [vmem:[#allocation4] sm:$0xff]
    %v901 = vld [vmem:[#allocation4 + $0x8] sm:$0xff]
    %v902 = vld [vmem:[#allocation4 + $0x10] sm:$0xff]
    %v903 = vld [vmem:[#allocation4 + $0x18] sm:$0xff]
    %v904 = vld [vmem:[#allocation4 + $0x20] sm:$0xff]
    %v905 = vld [vmem:[#allocation4 + $0x28] sm:$0xff]
    %v906 = vld [vmem:[#allocation4 + $0x30] sm:$0xff]
    %v907 = vld [vmem:[#allocation4 + $0x38] sm:$0xff]
    %v908 = vld [vmem:[%s83] sm:$0xff]
    %v909 = vld [vmem:[%s83 + $0x8] sm:$0xff]
    %v910 = vld [vmem:[%s83 + $0x10] sm:$0xff]
    %v911 = vld [vmem:[%s83 + $0x18] sm:$0xff]
    %v912 = vld [vmem:[%s83 + $0x20] sm:$0xff]
    %v913 = vld [vmem:[%s83 + $0x28] sm:$0xff]
    %v914 = vld [vmem:[%s83 + $0x30] sm:$0xff]
    %v915 = vld [vmem:[%s83 + $0x38] sm:$0xff]
    %918 = vrot.lane.b32.xlu0 %v898, 108
    %v919 = vpop.permute.xlu0 %918
    %920 = vrot.lane.b32.xlu0 %v899, 108
    %v921 = vpop.permute.xlu0 %920
    %v922 = vsel %vm98, %v919, 0
    %v924 = vsel %vm98, %v921, 0
    %926 = vmatpush.msra.mxu0 0.0
    %927 = vmatpush.msra.mxu0 0.0
    %928 = vmatpush.msra.mxu0 0.0
    %929 = vmatpush.msra.mxu0 0.0
    %930 = vmatpush.msra.mxu0 0.0
    %931 = vmatpush.msra.mxu0 0.0
    %932 = vmatpush.msra.mxu0 0.0
    %933 = vmatpush.msra.mxu0 0.0
    %934 = vmatpush.msra.mxu0 %v915
    %935 = vmatpush.msra.mxu0 %v914
    %936 = vmatpush.msra.mxu0 %v913
    %937 = vmatpush.msra.mxu0 %v912
    %938 = vmatpush.msra.mxu0 %v911
    %939 = vmatpush.msra.mxu0 %v910
    %940 = vmatpush.msra.mxu0 %v909
    %941 = vmatpush.msra.mxu0 %v908
    %942 = vmatmul.f32.gmra.mxu0 %v922
    %v943 = vpop.f32.mrf.mxu0
    %v944 = vadd.f32 0.0, %v943
    %945 = vmatmul.f32.gmra.mxu0 %v924
    %v946 = vpop.f32.mrf.mxu0
    %v947 = vadd.f32 0.0, %v946
    %948 = vdwg.mxu0
    %v949 = vsel %vm98, %v898, 0
    %v951 = vsel %vm98, %v899, 0
    %953 = vmatpush.msra.mxu0 0.0
    %954 = vmatpush.msra.mxu0 0.0
    %955 = vmatpush.msra.mxu0 0.0
    %956 = vmatpush.msra.mxu0 0.0
    %957 = vmatpush.msra.mxu0 0.0
    %958 = vmatpush.msra.mxu0 0.0
    %959 = vmatpush.msra.mxu0 0.0
    %960 = vmatpush.msra.mxu0 0.0
    %961 = vmatpush.msra.mxu0 %v907
    %962 = vmatpush.msra.mxu0 %v906
    %963 = vmatpush.msra.mxu0 %v905
    %964 = vmatpush.msra.mxu0 %v904
    %965 = vmatpush.msra.mxu0 %v903
    %966 = vmatpush.msra.mxu0 %v902
    %967 = vmatpush.msra.mxu0 %v901
    %968 = vmatpush.msra.mxu0 %v900
    %969 = vmatmul.f32.gmra.mxu0 %v949
    %v970 = vpop.f32.mrf.mxu0
    %v971 = vadd.f32 %v944, %v970
    %972 = vmatmul.f32.gmra.mxu0 %v951
    %v973 = vpop.f32.mrf.mxu0
    %v974 = vadd.f32 %v947, %v973
    %975 = vdwg.mxu0
    %v976 = vld [vmem:[%s153] sm:$0xff]
    %v977 = vld [vmem:[%s153 + $0x8] sm:$0xff]
    %v978 = vld [vmem:[%s153 + $0x10] sm:$0xff]
    %v979 = vld [vmem:[%s153 + $0x18] sm:$0xff]
    %v980 = vld [vmem:[%s153 + $0x20] sm:$0xff]
    %v981 = vld [vmem:[%s153 + $0x28] sm:$0xff]
    %v982 = vld [vmem:[%s153 + $0x30] sm:$0xff]
    %v983 = vld [vmem:[%s153 + $0x38] sm:$0xff]
    %984 = vrot.lane.b32.xlu0 %v898, 88
    %v985 = vpop.permute.xlu0 %984
    %986 = vrot.lane.b32.xlu0 %v899, 88
    %v987 = vpop.permute.xlu0 %986
    %v988 = vsel %vm98, %v985, 0
    %v990 = vsel %vm98, %v987, 0
    %992 = vmatpush.msra.mxu0 0.0
    %993 = vmatpush.msra.mxu0 0.0
    %994 = vmatpush.msra.mxu0 0.0
    %995 = vmatpush.msra.mxu0 0.0
    %996 = vmatpush.msra.mxu0 0.0
    %997 = vmatpush.msra.mxu0 0.0
    %998 = vmatpush.msra.mxu0 0.0
    %999 = vmatpush.msra.mxu0 0.0
    %1000 = vmatpush.msra.mxu0 %v983
    %1001 = vmatpush.msra.mxu0 %v982
    %1002 = vmatpush.msra.mxu0 %v981
    %1003 = vmatpush.msra.mxu0 %v980
    %1004 = vmatpush.msra.mxu0 %v979
    %1005 = vmatpush.msra.mxu0 %v978
    %1006 = vmatpush.msra.mxu0 %v977
    %1007 = vmatpush.msra.mxu0 %v976
    %1008 = vmatmul.f32.gmra.mxu0 %v988
    %v1009 = vpop.f32.mrf.mxu0
    %v1010 = vadd.f32 0.0, %v1009
    %1011 = vmatmul.f32.gmra.mxu0 %v990
    %v1012 = vpop.f32.mrf.mxu0
    %v1013 = vadd.f32 0.0, %v1012
    %1014 = vdwg.mxu0
    %v1015 = vadd.f32 %v971, %v1010
    %v1016 = vadd.f32 %v974, %v1013
    %v1017 = vld [vmem:[%s895 + $0x5] sm:$0xff]
    %v1018 = vld [vmem:[%s895 + $0xd] sm:$0xff]
    %v1019 = vld [vmem:[%s197] sm:$0xff]
    %v1020 = vld [vmem:[%s197 + $0x8] sm:$0xff]
    %v1021 = vld [vmem:[%s197 + $0x10] sm:$0xff]
    %v1022 = vld [vmem:[%s197 + $0x18] sm:$0xff]
    %v1023 = vld [vmem:[%s197 + $0x20] sm:$0xff]
    %v1024 = vld [vmem:[%s197 + $0x28] sm:$0xff]
    %v1025 = vld [vmem:[%s197 + $0x30] sm:$0xff]
    %v1026 = vld [vmem:[%s197 + $0x38] sm:$0xff]
    %v1028 = vsel %vm98, %v1017, 0
    %v1031 = vsel %vm98, %v1018, 0
    %1033 = vmatpush.msra.mxu0 0.0
    %1034 = vmatpush.msra.mxu0 0.0
    %1035 = vmatpush.msra.mxu0 0.0
    %1036 = vmatpush.msra.mxu0 0.0
    %1037 = vmatpush.msra.mxu0 0.0
    %1038 = vmatpush.msra.mxu0 0.0
    %1039 = vmatpush.msra.mxu0 0.0
    %1040 = vmatpush.msra.mxu0 0.0
    %1041 = vmatpush.msra.mxu0 %v1026
    %1042 = vmatpush.msra.mxu0 %v1025
    %1043 = vmatpush.msra.mxu0 %v1024
    %1044 = vmatpush.msra.mxu0 %v1023
    %1045 = vmatpush.msra.mxu0 %v1022
    %1046 = vmatpush.msra.mxu0 %v1021
    %1047 = vmatpush.msra.mxu0 %v1020
    %1048 = vmatpush.msra.mxu0 %v1019
    %1049 = vmatmul.f32.gmra.mxu0 %v1028
    %v1050 = vpop.f32.mrf.mxu0
    %v1051 = vadd.f32 0.0, %v1050
    %1052 = vmatmul.f32.gmra.mxu0 %v1031
    %v1053 = vpop.f32.mrf.mxu0
    %v1054 = vadd.f32 0.0, %v1053
    %1055 = vdwg.mxu0
    %v1056 = vadd.f32 %v1015, %v1051
    %v1057 = vadd.f32 %v1016, %v1054
    %v1058 = vld [vmem:[%s237] sm:$0xff]
    %v1059 = vld [vmem:[%s237 + $0x8] sm:$0xff]
    %v1060 = vld [vmem:[%s237 + $0x10] sm:$0xff]
    %v1061 = vld [vmem:[%s237 + $0x18] sm:$0xff]
    %v1062 = vld [vmem:[%s237 + $0x20] sm:$0xff]
    %v1063 = vld [vmem:[%s237 + $0x28] sm:$0xff]
    %v1064 = vld [vmem:[%s237 + $0x30] sm:$0xff]
    %v1065 = vld [vmem:[%s237 + $0x38] sm:$0xff]
    %1066 = vrot.lane.b32.xlu0 %v1017, 108
    %v1067 = vpop.permute.xlu0 %1066
    %1068 = vrot.lane.b32.xlu0 %v1018, 108
    %v1069 = vpop.permute.xlu0 %1068
    %v1070 = vsel %vm98, %v1067, 0
    %v1072 = vsel %vm98, %v1069, 0
    %1074 = vmatpush.msra.mxu0 0.0
    %1075 = vmatpush.msra.mxu0 0.0
    %1076 = vmatpush.msra.mxu0 0.0
    %1077 = vmatpush.msra.mxu0 0.0
    %1078 = vmatpush.msra.mxu0 0.0
    %1079 = vmatpush.msra.mxu0 0.0
    %1080 = vmatpush.msra.mxu0 0.0
    %1081 = vmatpush.msra.mxu0 0.0
    %1082 = vmatpush.msra.mxu0 %v1065
    %1083 = vmatpush.msra.mxu0 %v1064
    %1084 = vmatpush.msra.mxu0 %v1063
    %1085 = vmatpush.msra.mxu0 %v1062
    %1086 = vmatpush.msra.mxu0 %v1061
    %1087 = vmatpush.msra.mxu0 %v1060
    %1088 = vmatpush.msra.mxu0 %v1059
    %1089 = vmatpush.msra.mxu0 %v1058
    %1090 = vmatmul.f32.gmra.mxu0 %v1070
    %v1091 = vpop.f32.mrf.mxu0
    %v1092 = vadd.f32 0.0, %v1091
    %1093 = vmatmul.f32.gmra.mxu0 %v1072
    %v1094 = vpop.f32.mrf.mxu0
    %v1095 = vadd.f32 0.0, %v1094
    %1096 = vdwg.mxu0
    %v1097 = vadd.f32 %v1056, %v1092
    %v1098 = vadd.f32 %v1057, %v1095
    %v1099 = vld [vmem:[%s279] sm:$0xff]
    %v1100 = vld [vmem:[%s279 + $0x8] sm:$0xff]
    %v1101 = vld [vmem:[%s279 + $0x10] sm:$0xff]
    %v1102 = vld [vmem:[%s279 + $0x18] sm:$0xff]
    %v1103 = vld [vmem:[%s279 + $0x20] sm:$0xff]
    %v1104 = vld [vmem:[%s279 + $0x28] sm:$0xff]
    %v1105 = vld [vmem:[%s279 + $0x30] sm:$0xff]
    %v1106 = vld [vmem:[%s279 + $0x38] sm:$0xff]
    %1107 = vrot.lane.b32.xlu0 %v1017, 88
    %v1108 = vpop.permute.xlu0 %1107
    %1109 = vrot.lane.b32.xlu0 %v1018, 88
    %v1110 = vpop.permute.xlu0 %1109
    %v1111 = vsel %vm98, %v1108, 0
    %v1113 = vsel %vm98, %v1110, 0
    %1115 = vmatpush.msra.mxu0 0.0
    %1116 = vmatpush.msra.mxu0 0.0
    %1117 = vmatpush.msra.mxu0 0.0
    %1118 = vmatpush.msra.mxu0 0.0
    %1119 = vmatpush.msra.mxu0 0.0
    %1120 = vmatpush.msra.mxu0 0.0
    %1121 = vmatpush.msra.mxu0 0.0
    %1122 = vmatpush.msra.mxu0 0.0
    %1123 = vmatpush.msra.mxu0 %v1106
    %1124 = vmatpush.msra.mxu0 %v1105
    %1125 = vmatpush.msra.mxu0 %v1104
    %1126 = vmatpush.msra.mxu0 %v1103
    %1127 = vmatpush.msra.mxu0 %v1102
    %1128 = vmatpush.msra.mxu0 %v1101
    %1129 = vmatpush.msra.mxu0 %v1100
    %1130 = vmatpush.msra.mxu0 %v1099
    %1131 = vmatmul.f32.gmra.mxu0 %v1111
    %v1132 = vpop.f32.mrf.mxu0
    %v1133 = vadd.f32 0.0, %v1132
    %1134 = vmatmul.f32.gmra.mxu0 %v1113
    %v1135 = vpop.f32.mrf.mxu0
    %v1136 = vadd.f32 0.0, %v1135
    %1137 = vdwg.mxu0
    %v1138 = vadd.f32 %v1097, %v1133
    %v1139 = vadd.f32 %v1098, %v1136
    %v1140 = vld [vmem:[%s895 + $0xa] sm:$0xff]
    %v1141 = vld [vmem:[%s895 + $0x12] sm:$0xff]
    %v1142 = vld [vmem:[%s323] sm:$0xff]
    %v1143 = vld [vmem:[%s323 + $0x8] sm:$0xff]
    %v1144 = vld [vmem:[%s323 + $0x10] sm:$0xff]
    %v1145 = vld [vmem:[%s323 + $0x18] sm:$0xff]
    %v1146 = vld [vmem:[%s323 + $0x20] sm:$0xff]
    %v1147 = vld [vmem:[%s323 + $0x28] sm:$0xff]
    %v1148 = vld [vmem:[%s323 + $0x30] sm:$0xff]
    %v1149 = vld [vmem:[%s323 + $0x38] sm:$0xff]
    %v1151 = vsel %vm98, %v1140, 0
    %v1154 = vsel %vm98, %v1141, 0
    %1156 = vmatpush.msra.mxu0 0.0
    %1157 = vmatpush.msra.mxu0 0.0
    %1158 = vmatpush.msra.mxu0 0.0
    %1159 = vmatpush.msra.mxu0 0.0
    %1160 = vmatpush.msra.mxu0 0.0
    %1161 = vmatpush.msra.mxu0 0.0
    %1162 = vmatpush.msra.mxu0 0.0
    %1163 = vmatpush.msra.mxu0 0.0
    %1164 = vmatpush.msra.mxu0 %v1149
    %1165 = vmatpush.msra.mxu0 %v1148
    %1166 = vmatpush.msra.mxu0 %v1147
    %1167 = vmatpush.msra.mxu0 %v1146
    %1168 = vmatpush.msra.mxu0 %v1145
    %1169 = vmatpush.msra.mxu0 %v1144
    %1170 = vmatpush.msra.mxu0 %v1143
    %1171 = vmatpush.msra.mxu0 %v1142
    %1172 = vmatmul.f32.gmra.mxu0 %v1151
    %v1173 = vpop.f32.mrf.mxu0
    %v1174 = vadd.f32 0.0, %v1173
    %1175 = vmatmul.f32.gmra.mxu0 %v1154
    %v1176 = vpop.f32.mrf.mxu0
    %v1177 = vadd.f32 0.0, %v1176
    %1178 = vdwg.mxu0
    %v1179 = vadd.f32 %v1138, %v1174
    %v1180 = vadd.f32 %v1139, %v1177
    %v1181 = vld [vmem:[%s363] sm:$0xff]
    %v1182 = vld [vmem:[%s363 + $0x8] sm:$0xff]
    %v1183 = vld [vmem:[%s363 + $0x10] sm:$0xff]
    %v1184 = vld [vmem:[%s363 + $0x18] sm:$0xff]
    %v1185 = vld [vmem:[%s363 + $0x20] sm:$0xff]
    %v1186 = vld [vmem:[%s363 + $0x28] sm:$0xff]
    %v1187 = vld [vmem:[%s363 + $0x30] sm:$0xff]
    %v1188 = vld [vmem:[%s363 + $0x38] sm:$0xff]
    %1189 = vrot.lane.b32.xlu0 %v1140, 108
    %v1190 = vpop.permute.xlu0 %1189
    %1191 = vrot.lane.b32.xlu0 %v1141, 108
    %v1192 = vpop.permute.xlu0 %1191
    %v1193 = vsel %vm98, %v1190, 0
    %v1195 = vsel %vm98, %v1192, 0
    %1197 = vmatpush.msra.mxu0 0.0
    %1198 = vmatpush.msra.mxu0 0.0
    %1199 = vmatpush.msra.mxu0 0.0
    %1200 = vmatpush.msra.mxu0 0.0
    %1201 = vmatpush.msra.mxu0 0.0
    %1202 = vmatpush.msra.mxu0 0.0
    %1203 = vmatpush.msra.mxu0 0.0
    %1204 = vmatpush.msra.mxu0 0.0
    %1205 = vmatpush.msra.mxu0 %v1188
    %1206 = vmatpush.msra.mxu0 %v1187
    %1207 = vmatpush.msra.mxu0 %v1186
    %1208 = vmatpush.msra.mxu0 %v1185
    %1209 = vmatpush.msra.mxu0 %v1184
    %1210 = vmatpush.msra.mxu0 %v1183
    %1211 = vmatpush.msra.mxu0 %v1182
    %1212 = vmatpush.msra.mxu0 %v1181
    %1213 = vmatmul.f32.gmra.mxu0 %v1193
    %v1214 = vpop.f32.mrf.mxu0
    %v1215 = vadd.f32 0.0, %v1214
    %1216 = vmatmul.f32.gmra.mxu0 %v1195
    %v1217 = vpop.f32.mrf.mxu0
    %v1218 = vadd.f32 0.0, %v1217
    %1219 = vdwg.mxu0
    %v1220 = vadd.f32 %v1179, %v1215
    %v1221 = vadd.f32 %v1180, %v1218
    %v1222 = vld [vmem:[%s405] sm:$0xff]
    %v1223 = vld [vmem:[%s405 + $0x8] sm:$0xff]
    %v1224 = vld [vmem:[%s405 + $0x10] sm:$0xff]
    %v1225 = vld [vmem:[%s405 + $0x18] sm:$0xff]
    %v1226 = vld [vmem:[%s405 + $0x20] sm:$0xff]
    %v1227 = vld [vmem:[%s405 + $0x28] sm:$0xff]
    %v1228 = vld [vmem:[%s405 + $0x30] sm:$0xff]
    %v1229 = vld [vmem:[%s405 + $0x38] sm:$0xff]
    %1230 = vrot.lane.b32.xlu0 %v1140, 88
    %v1231 = vpop.permute.xlu0 %1230
    %1232 = vrot.lane.b32.xlu0 %v1141, 88
    %v1233 = vpop.permute.xlu0 %1232
    %v1234 = vsel %vm98, %v1231, 0
    %v1236 = vsel %vm98, %v1233, 0
    %1238 = vmatpush.msra.mxu0 0.0
    %1239 = vmatpush.msra.mxu0 0.0
    %1240 = vmatpush.msra.mxu0 0.0
    %1241 = vmatpush.msra.mxu0 0.0
    %1242 = vmatpush.msra.mxu0 0.0
    %1243 = vmatpush.msra.mxu0 0.0
    %1244 = vmatpush.msra.mxu0 0.0
    %1245 = vmatpush.msra.mxu0 0.0
    %1246 = vmatpush.msra.mxu0 %v1229
    %1247 = vmatpush.msra.mxu0 %v1228
    %1248 = vmatpush.msra.mxu0 %v1227
    %1249 = vmatpush.msra.mxu0 %v1226
    %1250 = vmatpush.msra.mxu0 %v1225
    %1251 = vmatpush.msra.mxu0 %v1224
    %1252 = vmatpush.msra.mxu0 %v1223
    %1253 = vmatpush.msra.mxu0 %v1222
    %1254 = vmatmul.f32.gmra.mxu0 %v1234
    %v1255 = vpop.f32.mrf.mxu0
    %v1256 = vadd.f32 0.0, %v1255
    %1257 = vmatmul.f32.gmra.mxu0 %v1236
    %v1258 = vpop.f32.mrf.mxu0
    %v1259 = vadd.f32 0.0, %v1258
    %1260 = vdwg.mxu0
    %v1261 = vadd.f32 %v1220, %v1256
    %v1262 = vadd.f32 %v1221, %v1259
    %v1263 = vadd.f32 %v1261, %v447
    %v1264 = vadd.f32 %v1262, %v447
    %v1265 = vmax.f32 %v1263, 0.0
    %v1266 = vmax.f32 %v1264, 0.0
    %1269 = vrot.lane.b32.xlu0 %v1265, 4
    %v1270 = vpop.permute.xlu0 %1269
    %1271 = vrot.lane.b32.xlu0 %v1266, 4
    %v1272 = vpop.permute.xlu0 %1271
    %s1275 = scalar_lea.vmem [#allocation3], 24
    %1276 = vst.msk [vmem:[%s1275 + $0x1] sm:$0xff] %vm460, %v1270
    %1277 = vst.msk [vmem:[%s1275 + $0x9] sm:$0xff] %vm460, %v1272
    %v1278 = vld [vmem:[%s1275] sm:$0xff]
    %v1279 = vld [vmem:[%s1275 + $0x8] sm:$0xff]
    %v1280 = vld [vmem:[%s465] sm:$0xff]
    %v1281 = vld [vmem:[%s465 + $0x8] sm:$0xff]
    %v1282 = vld [vmem:[%s465 + $0x10] sm:$0xff]
    %v1283 = vld [vmem:[%s465 + $0x18] sm:$0xff]
    %v1284 = vld [vmem:[%s465 + $0x20] sm:$0xff]
    %v1285 = vld [vmem:[%s465 + $0x28] sm:$0xff]
    %v1286 = vld [vmem:[%s465 + $0x30] sm:$0xff]
    %v1287 = vld [vmem:[%s465 + $0x38] sm:$0xff]
    %v1288 = vld [vmem:[%s474] sm:$0xff]
    %v1289 = vld [vmem:[%s474 + $0x8] sm:$0xff]
    %v1290 = vld [vmem:[%s474 + $0x10] sm:$0xff]
    %v1291 = vld [vmem:[%s474 + $0x18] sm:$0xff]
    %v1292 = vld [vmem:[%s474 + $0x20] sm:$0xff]
    %v1293 = vld [vmem:[%s474 + $0x28] sm:$0xff]
    %v1294 = vld [vmem:[%s474 + $0x30] sm:$0xff]
    %v1295 = vld [vmem:[%s474 + $0x38] sm:$0xff]
    %1298 = vrot.lane.b32.xlu0 %v1278, 124
    %v1299 = vpop.permute.xlu0 %1298
    %1300 = vrot.lane.b32.xlu0 %v1279, 124
    %v1301 = vpop.permute.xlu0 %1300
    %v1302 = vsel %vm98, %v1299, 0
    %v1304 = vsel %vm98, %v1301, 0
    %1306 = vmatpush.msra.mxu0 0.0
    %1307 = vmatpush.msra.mxu0 0.0
    %1308 = vmatpush.msra.mxu0 0.0
    %1309 = vmatpush.msra.mxu0 0.0
    %1310 = vmatpush.msra.mxu0 0.0
    %1311 = vmatpush.msra.mxu0 0.0
    %1312 = vmatpush.msra.mxu0 0.0
    %1313 = vmatpush.msra.mxu0 0.0
    %1314 = vmatpush.msra.mxu0 %v1295
    %1315 = vmatpush.msra.mxu0 %v1294
    %1316 = vmatpush.msra.mxu0 %v1293
    %1317 = vmatpush.msra.mxu0 %v1292
    %1318 = vmatpush.msra.mxu0 %v1291
    %1319 = vmatpush.msra.mxu0 %v1290
    %1320 = vmatpush.msra.mxu0 %v1289
    %1321 = vmatpush.msra.mxu0 %v1288
    %1322 = vmatmul.f32.gmra.mxu0 %v1302
    %v1323 = vpop.f32.mrf.mxu0
    %v1324 = vadd.f32 0.0, %v1323
    %1325 = vmatmul.f32.gmra.mxu0 %v1304
    %v1326 = vpop.f32.mrf.mxu0
    %v1327 = vadd.f32 0.0, %v1326
    %1328 = vdwg.mxu0
    %v1329 = vsel %vm98, %v1278, 0
    %v1331 = vsel %vm98, %v1279, 0
    %1333 = vmatpush.msra.mxu0 0.0
    %1334 = vmatpush.msra.mxu0 0.0
    %1335 = vmatpush.msra.mxu0 0.0
    %1336 = vmatpush.msra.mxu0 0.0
    %1337 = vmatpush.msra.mxu0 0.0
    %1338 = vmatpush.msra.mxu0 0.0
    %1339 = vmatpush.msra.mxu0 0.0
    %1340 = vmatpush.msra.mxu0 0.0
    %1341 = vmatpush.msra.mxu0 %v1287
    %1342 = vmatpush.msra.mxu0 %v1286
    %1343 = vmatpush.msra.mxu0 %v1285
    %1344 = vmatpush.msra.mxu0 %v1284
    %1345 = vmatpush.msra.mxu0 %v1283
    %1346 = vmatpush.msra.mxu0 %v1282
    %1347 = vmatpush.msra.mxu0 %v1281
    %1348 = vmatpush.msra.mxu0 %v1280
    %1349 = vmatmul.f32.gmra.mxu0 %v1329
    %v1350 = vpop.f32.mrf.mxu0
    %v1351 = vadd.f32 %v1324, %v1350
    %1352 = vmatmul.f32.gmra.mxu0 %v1331
    %v1353 = vpop.f32.mrf.mxu0
    %v1354 = vadd.f32 %v1327, %v1353
    %1355 = vdwg.mxu0
    %v1356 = vld [vmem:[%s543] sm:$0xff]
    %v1357 = vld [vmem:[%s543 + $0x8] sm:$0xff]
    %v1358 = vld [vmem:[%s543 + $0x10] sm:$0xff]
    %v1359 = vld [vmem:[%s543 + $0x18] sm:$0xff]
    %v1360 = vld [vmem:[%s543 + $0x20] sm:$0xff]
    %v1361 = vld [vmem:[%s543 + $0x28] sm:$0xff]
    %v1362 = vld [vmem:[%s543 + $0x30] sm:$0xff]
    %v1363 = vld [vmem:[%s543 + $0x38] sm:$0xff]
    %1364 = vrot.lane.b32.xlu0 %v1278, 120
    %v1365 = vpop.permute.xlu0 %1364
    %1366 = vrot.lane.b32.xlu0 %v1279, 120
    %v1367 = vpop.permute.xlu0 %1366
    %v1368 = vsel %vm98, %v1365, 0
    %v1370 = vsel %vm98, %v1367, 0
    %1372 = vmatpush.msra.mxu0 0.0
    %1373 = vmatpush.msra.mxu0 0.0
    %1374 = vmatpush.msra.mxu0 0.0
    %1375 = vmatpush.msra.mxu0 0.0
    %1376 = vmatpush.msra.mxu0 0.0
    %1377 = vmatpush.msra.mxu0 0.0
    %1378 = vmatpush.msra.mxu0 0.0
    %1379 = vmatpush.msra.mxu0 0.0
    %1380 = vmatpush.msra.mxu0 %v1363
    %1381 = vmatpush.msra.mxu0 %v1362
    %1382 = vmatpush.msra.mxu0 %v1361
    %1383 = vmatpush.msra.mxu0 %v1360
    %1384 = vmatpush.msra.mxu0 %v1359
    %1385 = vmatpush.msra.mxu0 %v1358
    %1386 = vmatpush.msra.mxu0 %v1357
    %1387 = vmatpush.msra.mxu0 %v1356
    %1388 = vmatmul.f32.gmra.mxu0 %v1368
    %v1389 = vpop.f32.mrf.mxu0
    %v1390 = vadd.f32 0.0, %v1389
    %1391 = vmatmul.f32.gmra.mxu0 %v1370
    %v1392 = vpop.f32.mrf.mxu0
    %v1393 = vadd.f32 0.0, %v1392
    %1394 = vdwg.mxu0
    %v1395 = vadd.f32 %v1351, %v1390
    %v1396 = vadd.f32 %v1354, %v1393
    %v1397 = vld [vmem:[%s1275 + $0x1] sm:$0xff]
    %v1398 = vld [vmem:[%s1275 + $0x9] sm:$0xff]
    %v1399 = vld [vmem:[%s587] sm:$0xff]
    %v1400 = vld [vmem:[%s587 + $0x8] sm:$0xff]
    %v1401 = vld [vmem:[%s587 + $0x10] sm:$0xff]
    %v1402 = vld [vmem:[%s587 + $0x18] sm:$0xff]
    %v1403 = vld [vmem:[%s587 + $0x20] sm:$0xff]
    %v1404 = vld [vmem:[%s587 + $0x28] sm:$0xff]
    %v1405 = vld [vmem:[%s587 + $0x30] sm:$0xff]
    %v1406 = vld [vmem:[%s587 + $0x38] sm:$0xff]
    %v1408 = vsel %vm98, %v1397, 0
    %v1411 = vsel %vm98, %v1398, 0
    %1413 = vmatpush.msra.mxu0 0.0
    %1414 = vmatpush.msra.mxu0 0.0
    %1415 = vmatpush.msra.mxu0 0.0
    %1416 = vmatpush.msra.mxu0 0.0
    %1417 = vmatpush.msra.mxu0 0.0
    %1418 = vmatpush.msra.mxu0 0.0
    %1419 = vmatpush.msra.mxu0 0.0
    %1420 = vmatpush.msra.mxu0 0.0
    %1421 = vmatpush.msra.mxu0 %v1406
    %1422 = vmatpush.msra.mxu0 %v1405
    %1423 = vmatpush.msra.mxu0 %v1404
    %1424 = vmatpush.msra.mxu0 %v1403
    %1425 = vmatpush.msra.mxu0 %v1402
    %1426 = vmatpush.msra.mxu0 %v1401
    %1427 = vmatpush.msra.mxu0 %v1400
    %1428 = vmatpush.msra.mxu0 %v1399
    %1429 = vmatmul.f32.gmra.mxu0 %v1408
    %v1430 = vpop.f32.mrf.mxu0
    %v1431 = vadd.f32 0.0, %v1430
    %1432 = vmatmul.f32.gmra.mxu0 %v1411
    %v1433 = vpop.f32.mrf.mxu0
    %v1434 = vadd.f32 0.0, %v1433
    %1435 = vdwg.mxu0
    %v1436 = vadd.f32 %v1395, %v1431
    %v1437 = vadd.f32 %v1396, %v1434
    %v1438 = vld [vmem:[%s627] sm:$0xff]
    %v1439 = vld [vmem:[%s627 + $0x8] sm:$0xff]
    %v1440 = vld [vmem:[%s627 + $0x10] sm:$0xff]
    %v1441 = vld [vmem:[%s627 + $0x18] sm:$0xff]
    %v1442 = vld [vmem:[%s627 + $0x20] sm:$0xff]
    %v1443 = vld [vmem:[%s627 + $0x28] sm:$0xff]
    %v1444 = vld [vmem:[%s627 + $0x30] sm:$0xff]
    %v1445 = vld [vmem:[%s627 + $0x38] sm:$0xff]
    %1446 = vrot.lane.b32.xlu0 %v1397, 124
    %v1447 = vpop.permute.xlu0 %1446
    %1448 = vrot.lane.b32.xlu0 %v1398, 124
    %v1449 = vpop.permute.xlu0 %1448
    %v1450 = vsel %vm98, %v1447, 0
    %v1452 = vsel %vm98, %v1449, 0
    %1454 = vmatpush.msra.mxu0 0.0
    %1455 = vmatpush.msra.mxu0 0.0
    %1456 = vmatpush.msra.mxu0 0.0
    %1457 = vmatpush.msra.mxu0 0.0
    %1458 = vmatpush.msra.mxu0 0.0
    %1459 = vmatpush.msra.mxu0 0.0
    %1460 = vmatpush.msra.mxu0 0.0
    %1461 = vmatpush.msra.mxu0 0.0
    %1462 = vmatpush.msra.mxu0 %v1445
    %1463 = vmatpush.msra.mxu0 %v1444
    %1464 = vmatpush.msra.mxu0 %v1443
    %1465 = vmatpush.msra.mxu0 %v1442
    %1466 = vmatpush.msra.mxu0 %v1441
    %1467 = vmatpush.msra.mxu0 %v1440
    %1468 = vmatpush.msra.mxu0 %v1439
    %1469 = vmatpush.msra.mxu0 %v1438
    %1470 = vmatmul.f32.gmra.mxu0 %v1450
    %v1471 = vpop.f32.mrf.mxu0
    %v1472 = vadd.f32 0.0, %v1471
    %1473 = vmatmul.f32.gmra.mxu0 %v1452
    %v1474 = vpop.f32.mrf.mxu0
    %v1475 = vadd.f32 0.0, %v1474
    %1476 = vdwg.mxu0
    %v1477 = vadd.f32 %v1436, %v1472
    %v1478 = vadd.f32 %v1437, %v1475
    %v1479 = vld [vmem:[%s669] sm:$0xff]
    %v1480 = vld [vmem:[%s669 + $0x8] sm:$0xff]
    %v1481 = vld [vmem:[%s669 + $0x10] sm:$0xff]
    %v1482 = vld [vmem:[%s669 + $0x18] sm:$0xff]
    %v1483 = vld [vmem:[%s669 + $0x20] sm:$0xff]
    %v1484 = vld [vmem:[%s669 + $0x28] sm:$0xff]
    %v1485 = vld [vmem:[%s669 + $0x30] sm:$0xff]
    %v1486 = vld [vmem:[%s669 + $0x38] sm:$0xff]
    %1487 = vrot.lane.b32.xlu0 %v1397, 120
    %v1488 = vpop.permute.xlu0 %1487
    %1489 = vrot.lane.b32.xlu0 %v1398, 120
    %v1490 = vpop.permute.xlu0 %1489
    %v1491 = vsel %vm98, %v1488, 0
    %v1493 = vsel %vm98, %v1490, 0
    %1495 = vmatpush.msra.mxu0 0.0
    %1496 = vmatpush.msra.mxu0 0.0
    %1497 = vmatpush.msra.mxu0 0.0
    %1498 = vmatpush.msra.mxu0 0.0
    %1499 = vmatpush.msra.mxu0 0.0
    %1500 = vmatpush.msra.mxu0 0.0
    %1501 = vmatpush.msra.mxu0 0.0
    %1502 = vmatpush.msra.mxu0 0.0
    %1503 = vmatpush.msra.mxu0 %v1486
    %1504 = vmatpush.msra.mxu0 %v1485
    %1505 = vmatpush.msra.mxu0 %v1484
    %1506 = vmatpush.msra.mxu0 %v1483
    %1507 = vmatpush.msra.mxu0 %v1482
    %1508 = vmatpush.msra.mxu0 %v1481
    %1509 = vmatpush.msra.mxu0 %v1480
    %1510 = vmatpush.msra.mxu0 %v1479
    %1511 = vmatmul.f32.gmra.mxu0 %v1491
    %v1512 = vpop.f32.mrf.mxu0
    %v1513 = vadd.f32 0.0, %v1512
    %1514 = vmatmul.f32.gmra.mxu0 %v1493
    %v1515 = vpop.f32.mrf.mxu0
    %v1516 = vadd.f32 0.0, %v1515
    %1517 = vdwg.mxu0
    %v1518 = vadd.f32 %v1477, %v1513
    %v1519 = vadd.f32 %v1478, %v1516
    %v1520 = vld [vmem:[%s1275 + $0x2] sm:$0xff]
    %v1521 = vld [vmem:[%s1275 + $0xa] sm:$0xff]
    %v1522 = vld [vmem:[%s713] sm:$0xff]
    %v1523 = vld [vmem:[%s713 + $0x8] sm:$0xff]
    %v1524 = vld [vmem:[%s713 + $0x10] sm:$0xff]
    %v1525 = vld [vmem:[%s713 + $0x18] sm:$0xff]
    %v1526 = vld [vmem:[%s713 + $0x20] sm:$0xff]
    %v1527 = vld [vmem:[%s713 + $0x28] sm:$0xff]
    %v1528 = vld [vmem:[%s713 + $0x30] sm:$0xff]
    %v1529 = vld [vmem:[%s713 + $0x38] sm:$0xff]
    %v1531 = vsel %vm98, %v1520, 0
    %v1534 = vsel %vm98, %v1521, 0
    %1536 = vmatpush.msra.mxu0 0.0
    %1537 = vmatpush.msra.mxu0 0.0
    %1538 = vmatpush.msra.mxu0 0.0
    %1539 = vmatpush.msra.mxu0 0.0
    %1540 = vmatpush.msra.mxu0 0.0
    %1541 = vmatpush.msra.mxu0 0.0
    %1542 = vmatpush.msra.mxu0 0.0
    %1543 = vmatpush.msra.mxu0 0.0
    %1544 = vmatpush.msra.mxu0 %v1529
    %1545 = vmatpush.msra.mxu0 %v1528
    %1546 = vmatpush.msra.mxu0 %v1527
    %1547 = vmatpush.msra.mxu0 %v1526
    %1548 = vmatpush.msra.mxu0 %v1525
    %1549 = vmatpush.msra.mxu0 %v1524
    %1550 = vmatpush.msra.mxu0 %v1523
    %1551 = vmatpush.msra.mxu0 %v1522
    %1552 = vmatmul.f32.gmra.mxu0 %v1531
    %v1553 = vpop.f32.mrf.mxu0
    %v1554 = vadd.f32 0.0, %v1553
    %1555 = vmatmul.f32.gmra.mxu0 %v1534
    %v1556 = vpop.f32.mrf.mxu0
    %v1557 = vadd.f32 0.0, %v1556
    %1558 = vdwg.mxu0
    %v1559 = vadd.f32 %v1518, %v1554
    %v1560 = vadd.f32 %v1519, %v1557
    %v1561 = vld [vmem:[%s753] sm:$0xff]
    %v1562 = vld [vmem:[%s753 + $0x8] sm:$0xff]
    %v1563 = vld [vmem:[%s753 + $0x10] sm:$0xff]
    %v1564 = vld [vmem:[%s753 + $0x18] sm:$0xff]
    %v1565 = vld [vmem:[%s753 + $0x20] sm:$0xff]
    %v1566 = vld [vmem:[%s753 + $0x28] sm:$0xff]
    %v1567 = vld [vmem:[%s753 + $0x30] sm:$0xff]
    %v1568 = vld [vmem:[%s753 + $0x38] sm:$0xff]
    %1569 = vrot.lane.b32.xlu0 %v1520, 124
    %v1570 = vpop.permute.xlu0 %1569
    %1571 = vrot.lane.b32.xlu0 %v1521, 124
    %v1572 = vpop.permute.xlu0 %1571
    %v1573 = vsel %vm98, %v1570, 0
    %v1575 = vsel %vm98, %v1572, 0
    %1577 = vmatpush.msra.mxu0 0.0
    %1578 = vmatpush.msra.mxu0 0.0
    %1579 = vmatpush.msra.mxu0 0.0
    %1580 = vmatpush.msra.mxu0 0.0
    %1581 = vmatpush.msra.mxu0 0.0
    %1582 = vmatpush.msra.mxu0 0.0
    %1583 = vmatpush.msra.mxu0 0.0
    %1584 = vmatpush.msra.mxu0 0.0
    %1585 = vmatpush.msra.mxu0 %v1568
    %1586 = vmatpush.msra.mxu0 %v1567
    %1587 = vmatpush.msra.mxu0 %v1566
    %1588 = vmatpush.msra.mxu0 %v1565
    %1589 = vmatpush.msra.mxu0 %v1564
    %1590 = vmatpush.msra.mxu0 %v1563
    %1591 = vmatpush.msra.mxu0 %v1562
    %1592 = vmatpush.msra.mxu0 %v1561
    %1593 = vmatmul.f32.gmra.mxu0 %v1573
    %v1594 = vpop.f32.mrf.mxu0
    %v1595 = vadd.f32 0.0, %v1594
    %1596 = vmatmul.f32.gmra.mxu0 %v1575
    %v1597 = vpop.f32.mrf.mxu0
    %v1598 = vadd.f32 0.0, %v1597
    %1599 = vdwg.mxu0
    %v1600 = vadd.f32 %v1559, %v1595
    %v1601 = vadd.f32 %v1560, %v1598
    %v1602 = vld [vmem:[%s795] sm:$0xff]
    %v1603 = vld [vmem:[%s795 + $0x8] sm:$0xff]
    %v1604 = vld [vmem:[%s795 + $0x10] sm:$0xff]
    %v1605 = vld [vmem:[%s795 + $0x18] sm:$0xff]
    %v1606 = vld [vmem:[%s795 + $0x20] sm:$0xff]
    %v1607 = vld [vmem:[%s795 + $0x28] sm:$0xff]
    %v1608 = vld [vmem:[%s795 + $0x30] sm:$0xff]
    %v1609 = vld [vmem:[%s795 + $0x38] sm:$0xff]
    %1610 = vrot.lane.b32.xlu0 %v1520, 120
    %v1611 = vpop.permute.xlu0 %1610
    %1612 = vrot.lane.b32.xlu0 %v1521, 120
    %v1613 = vpop.permute.xlu0 %1612
    %v1614 = vsel %vm98, %v1611, 0
    %v1616 = vsel %vm98, %v1613, 0
    %1618 = vmatpush.msra.mxu0 0.0
    %1619 = vmatpush.msra.mxu0 0.0
    %1620 = vmatpush.msra.mxu0 0.0
    %1621 = vmatpush.msra.mxu0 0.0
    %1622 = vmatpush.msra.mxu0 0.0
    %1623 = vmatpush.msra.mxu0 0.0
    %1624 = vmatpush.msra.mxu0 0.0
    %1625 = vmatpush.msra.mxu0 0.0
    %1626 = vmatpush.msra.mxu0 %v1609
    %1627 = vmatpush.msra.mxu0 %v1608
    %1628 = vmatpush.msra.mxu0 %v1607
    %1629 = vmatpush.msra.mxu0 %v1606
    %1630 = vmatpush.msra.mxu0 %v1605
    %1631 = vmatpush.msra.mxu0 %v1604
    %1632 = vmatpush.msra.mxu0 %v1603
    %1633 = vmatpush.msra.mxu0 %v1602
    %1634 = vmatmul.f32.gmra.mxu0 %v1614
    %v1635 = vpop.f32.mrf.mxu0
    %v1636 = vadd.f32 0.0, %v1635
    %1637 = vmatmul.f32.gmra.mxu0 %v1616
    %v1638 = vpop.f32.mrf.mxu0
    %v1639 = vadd.f32 0.0, %v1638
    %1640 = vdwg.mxu0
    %v1641 = vadd.f32 %v1600, %v1636
    %v1642 = vadd.f32 %v1601, %v1639
    %v1643 = vadd.f32 %v1641, %v837
    %v1644 = vadd.f32 %v1642, %v837
    %v1645 = vmax.f32 %v1643, 0.0
    %v1646 = vmax.f32 %v1644, 0.0
    %v1647 = vld [vmem:[%s2] sm:$0xff]
    %v1648 = vld [vmem:[%s2 + $0x8] sm:$0xff]
    %v1649 = vld [vmem:[%s2 + $0x10] sm:$0xff]
    %v1650 = vld [vmem:[%s2 + $0x18] sm:$0xff]
    %v1651 = vld [vmem:[%s2 + $0x20] sm:$0xff]
    %v1652 = vld [vmem:[%s2 + $0x28] sm:$0xff]
    %v1653 = vld [vmem:[%s2 + $0x30] sm:$0xff]
    %v1654 = vld [vmem:[%s2 + $0x38] sm:$0xff]
    %v1656 = vsel %vm98, %v1645, 0
    %v1659 = vsel %vm98, %v1646, 0
    %1661 = vmatpush.msra.mxu0 0.0
    %1662 = vmatpush.msra.mxu0 0.0
    %1663 = vmatpush.msra.mxu0 0.0
    %1664 = vmatpush.msra.mxu0 0.0
    %1665 = vmatpush.msra.mxu0 0.0
    %1666 = vmatpush.msra.mxu0 0.0
    %1667 = vmatpush.msra.mxu0 0.0
    %1668 = vmatpush.msra.mxu0 0.0
    %1669 = vmatpush.msra.mxu0 %v1654
    %1670 = vmatpush.msra.mxu0 %v1653
    %1671 = vmatpush.msra.mxu0 %v1652
    %1672 = vmatpush.msra.mxu0 %v1651
    %1673 = vmatpush.msra.mxu0 %v1650
    %1674 = vmatpush.msra.mxu0 %v1649
    %1675 = vmatpush.msra.mxu0 %v1648
    %1676 = vmatpush.msra.mxu0 %v1647
    %1677 = vmatmul.f32.gmra.mxu0 %v1656
    %v1678 = vpop.f32.mrf.mxu0
    %v1679 = vadd.f32 %v851, %v1678
    %1680 = vmatmul.f32.gmra.mxu0 %v1659
    %v1681 = vpop.f32.mrf.mxu0
    %v1682 = vadd.f32 %v851, %v1681
    %1683 = vdwg.mxu0
    %s1684 = scalar_lea.vmem %s5, 16
    %1685 = vst [vmem:[%s1684] sm:$0xff] %v1679
    %1686 = vst [vmem:[%s1684 + $0x8] sm:$0xff] %v1682
    // Predicated region
    $region30: #{block_type_c_forward.1} parent=1 // pred_check
      _
    $region31: #{block_type_c_forward.1} parent=1 // pred_check_branch
      %1688 = sbr.rel (0) target = $region33
    $region32: #{block_type_c_forward.1} parent=1 // pred_region
      _
    $region33: #{block_type_c_forward.1} parent=1 // pred_fallthru
      _
    // Predicated region
    $region34: #{block_type_c_forward.1} parent=1 // pred_check
      _
    $region35: #{block_type_c_forward.1} parent=1 // pred_check_branch
      %1690 = sbr.rel (0) target = $region37
    $region36: #{block_type_c_forward.1} parent=1 // pred_region
      _
    $region37: #{block_type_c_forward.1} parent=1 // pred_fallthru
      _
    %1691 = vsyncpa [#allocation5], 1

</llo_original>
